<compile_context>
chip_gen: v5e
topology: v5e:2x2
jax: 0.10.0
libtpu: 0.0.40
codegen_flags: <defaults>
</compile_context>

<pallas_src>
import functools

import jax
import jax.numpy as jnp
from jax import lax
from jax.experimental import pallas as pl
from jax.experimental.pallas import tpu as pltpu

NUM_FILTERS = 80
CP = 128          # padded channel / lane width (80 -> 128, 32 -> 128)
X0 = 8            # 8-aligned row in the scratch buffer where the activation starts


def _conv3(buf_ref, w_ref, b_ref, x, pad_top, pad_bot, apply_relu):
    """(3, C) conv along H, fused into a single MXU matmul.

    x:      (H, CP) f32 value
    w_ref:  (3*CP, CP) fused weight ref, rows ordered [kh*CP + cin]
    b_ref:  (1, CP) bias ref
    pad_top / pad_bot in {0, 1}: implicit zero-padding rows applied before the conv.
    Returns (H + pad_top + pad_bot - 2, CP) f32.
    """
    h, cp = x.shape
    if apply_relu:
        x = jnp.maximum(x, 0.0)                       # relu commutes with zero padding
    zero_row = jnp.zeros((1, cp), jnp.float32)
    if pad_top:
        buf_ref[pl.ds(X0 - 1, 1), :] = zero_row       # top pad slot (only if read)
    if pad_bot:
        buf_ref[pl.ds(X0 + h, 1), :] = zero_row       # bottom pad slot (only if read)
    buf_ref[pl.ds(X0, h), :] = x                      # activation rows (8-aligned start)
    ho = h + pad_top + pad_bot - 2
    d = X0 - pad_top
    # three shifted windows, concatenated on the lane axis (128-lane boundaries).
    lhs = jnp.concatenate(
        [buf_ref[pl.ds(d + kh, ho), :] for kh in range(3)], axis=1)   # (ho, 3*CP)
    return jnp.dot(lhs, w_ref[...], preferred_element_type=jnp.float32) + b_ref[...]


def _maxpool3_s2_padbot(buf_ref, x):
    """ZeroPad2d((0,0,0,1)) + MaxPool2d((3,1), stride=2) along H."""
    h, cp = x.shape
    buf_ref[pl.ds(X0 + h, 1), :] = jnp.zeros((1, cp), jnp.float32)    # bottom pad slot
    buf_ref[pl.ds(X0, h), :] = x
    hm = h - 1                                        # sliding-window-max rows
    m = jnp.maximum(
        jnp.maximum(buf_ref[pl.ds(X0, hm), :], buf_ref[pl.ds(X0 + 1, hm), :]),
        buf_ref[pl.ds(X0 + 2, hm), :])
    hp = (h - 2) // 2 + 1                             # pooled rows (stride 2)
    if hp == 1:
        return m[0:1, :]
    # stride-2 downsample as one selection-matrix matmul (no per-row slice+concat).
    rows = lax.broadcasted_iota(jnp.int32, (hp, hm), 0)
    cols = lax.broadcasted_iota(jnp.int32, (hp, hm), 1)
    sel = (cols == 2 * rows).astype(jnp.float32)
    return jnp.dot(sel, m, preferred_element_type=jnp.float32)


def dpcnn_kernel(emb_ref, w0_ref, b0_ref, w1_ref, b1_ref, wl_ref, bl_ref,
                 onehot_ref, loss_ref, logits_ref, buf_ref, *, num_labels):
    x = emb_ref[0]                                                    # (L, CP)

    # conv_region ; pad1 + relu + conv ; pad2 + relu + conv
    x = _conv3(buf_ref, w0_ref, b0_ref, x, 0, 0, apply_relu=False)    # (L-2, CP)
    x = _conv3(buf_ref, w1_ref, b1_ref, x, 1, 1, apply_relu=True)     # (L-2, CP)
    x = _conv3(buf_ref, w1_ref, b1_ref, x, 0, 1, apply_relu=True)     # (L-3, CP)

    # repeated _block (static shapes -> fully unrolled at trace time)
    while x.shape[0] > 2:
        px = _maxpool3_s2_padbot(buf_ref, x)                          # (Hp, CP)
        x = _conv3(buf_ref, w1_ref, b1_ref, px, 1, 1, apply_relu=True)
        x = _conv3(buf_ref, w1_ref, b1_ref, x, 1, 1, apply_relu=True)
        x = x + px

    feat = x                                                          # (1, CP); final H == 1

    # linear layer, lane-padded to CP output lanes (padded weight cols are zero)
    logits = jnp.dot(feat, wl_ref[...],
                     preferred_element_type=jnp.float32) + bl_ref[...]    # (1, CP)
    logits_ref[...] = logits.reshape(logits_ref.shape)                    # full 128-lane store

    # per-example cross entropy over the first num_labels lanes
    lane = lax.broadcasted_iota(jnp.int32, logits.shape, 1)
    masked = jnp.where(lane < num_labels, logits, jnp.float32(-1e30))
    mx = jnp.max(masked, axis=-1, keepdims=True)
    z = masked - mx
    lse = jnp.log(jnp.sum(jnp.exp(z), axis=-1, keepdims=True))
    logp = z - lse
    # one-hot is zero on the padded lanes, so they contribute exactly 0.
    per_ex = -jnp.sum(onehot_ref[0] * logp, axis=-1, keepdims=True)       # (1, 1)
    loss_ref[...] = per_ex.reshape(loss_ref.shape)


def _final_height(L):
    h = L - 2                      # conv_region
    h = h                          # pad1 + conv (height preserved)
    h = h - 1                      # pad2 + conv
    while h > 2:
        h = (h - 2) // 2 + 1       # pad2 + maxpool(3, stride 2); convs preserve height
    return h


def dpcnn_forward(emb_table, input_ids, labels, params, num_labels=2):
    W_region, b_region, W_conv, b_conv, W_lin, b_lin = params
    B, L = input_ids.shape
    E = emb_table.shape[1]
    F = W_conv.shape[0]
    assert E <= CP and F <= CP and num_labels <= CP
    assert _final_height(L) == 1, (
        f"sequence length {L} leaves final feature height {_final_height(L)}; "
        "the PyTorch model's squeeze/linear only works when it is 1")

    # glue: embedding gather (+ lane padding to CP) and one-hot labels
    # TODO(synk): for production B*L, gather in-kernel via PrefetchScalarGridSpec ids.
    emb = jnp.take(emb_table, input_ids, axis=0).astype(jnp.float32)      # (B, L, E)
    emb = jnp.pad(emb, ((0, 0), (0, 0), (0, CP - E)))                     # (B, L, CP)
    onehot = jax.nn.one_hot(labels, num_labels,
                            dtype=jnp.float32).reshape(B, 1, num_labels)
    onehot = jnp.pad(onehot, ((0, 0), (0, 0), (0, CP - num_labels)))      # (B, 1, CP)

    # fused / lane-padded weights
    w0 = jnp.transpose(W_region[:, 0, :, :], (1, 2, 0))                   # (3, E, F)
    w0 = jnp.pad(w0, ((0, 0), (0, CP - E), (0, CP - F))).reshape(3 * CP, CP)
    b0 = jnp.pad(b_region.reshape(1, F), ((0, 0), (0, CP - F)))
    w1 = jnp.transpose(W_conv[:, :, :, 0], (2, 1, 0))                     # (3, Fin, Fout)
    w1 = jnp.pad(w1, ((0, 0), (0, CP - F), (0, CP - F))).reshape(3 * CP, CP)
    b1 = jnp.pad(b_conv.reshape(1, F), ((0, 0), (0, CP - F)))
    wl = jnp.pad(W_lin.T, ((0, CP - F), (0, CP - num_labels)))            # (CP, CP)
    bl = jnp.pad(b_lin.reshape(1, num_labels), ((0, 0), (0, CP - num_labels)))

    buf_rows = ((X0 + L + 1 + 7) // 8) * 8                                # scratch height

    kernel = functools.partial(dpcnn_kernel, num_labels=num_labels)

    loss_pe, logits_pad = pl.pallas_call(
        kernel,
        out_shape=(jax.ShapeDtypeStruct((B, 1, 1), jnp.float32),
                   jax.ShapeDtypeStruct((B, 1, CP), jnp.float32)),
        grid_spec=pltpu.PrefetchScalarGridSpec(
            num_scalar_prefetch=0,
            grid=(B,),
            in_specs=[
                pl.BlockSpec((1, L, CP), lambda b: (b, 0, 0)),            # embeddings
                pl.BlockSpec((3 * CP, CP), lambda b: (0, 0)),             # w0 (fused region conv)
                pl.BlockSpec((1, CP), lambda b: (0, 0)),                  # b0
                pl.BlockSpec((3 * CP, CP), lambda b: (0, 0)),             # w1 (fused conv)
                pl.BlockSpec((1, CP), lambda b: (0, 0)),                  # b1
                pl.BlockSpec((CP, CP), lambda b: (0, 0)),                 # linear W (lane-padded)
                pl.BlockSpec((1, CP), lambda b: (0, 0)),                  # linear b (lane-padded)
                pl.BlockSpec((1, 1, CP), lambda b: (b, 0, 0)),            # one-hot labels (padded)
            ],
            out_specs=[
                pl.BlockSpec((1, 1, 1), lambda b: (b, 0, 0)),             # per-example loss
                pl.BlockSpec((1, 1, CP), lambda b: (b, 0, 0)),            # lane-dense logits
            ],
            scratch_shapes=[pltpu.VMEM((buf_rows, CP), jnp.float32)],
        ),
        compiler_params=pltpu.CompilerParams(
            dimension_semantics=("parallel",)),
    )(emb, w0, b0, w1, b1, wl, bl, onehot)

    logits = logits_pad[:, 0, :num_labels]                                # (B, num_labels)
    loss = jnp.mean(loss_pe)                                              # CE mean reduction
    return loss, logits


def ref_forward(emb_table, input_ids, labels, params, num_labels=2):
    """Pure-JAX NCHW reference mirroring the PyTorch module exactly."""
    W_region, b_region, W_conv, b_conv, W_lin, b_lin = params
    dn = ('NCHW', 'OIHW', 'NCHW')
    hp = lax.Precision.HIGHEST

    def pad1(t):  # ZeroPad2d((0,0,1,1))
        return jnp.pad(t, ((0, 0), (0, 0), (1, 1), (0, 0)))

    def pad2(t):  # ZeroPad2d((0,0,0,1))
        return jnp.pad(t, ((0, 0), (0, 0), (0, 1), (0, 0)))

    def conv(t):
        return lax.conv_general_dilated(t, W_conv, (1, 1), 'VALID',
                                        dimension_numbers=dn, precision=hp) \
               + b_conv.reshape(1, -1, 1, 1)

    x = emb_table[input_ids][:, None, :, :]                       # (B,1,L,E)
    x = lax.conv_general_dilated(x, W_region, (1, 1), 'VALID',
                                 dimension_numbers=dn, precision=hp) \
        + b_region.reshape(1, -1, 1, 1)
    x = pad1(x); x = jax.nn.relu(x); x = conv(x)
    x = pad2(x); x = jax.nn.relu(x); x = conv(x)
    while x.shape[2] > 2:
        x = pad2(x)
        px = lax.reduce_window(x, -jnp.inf, lax.max,
                               (1, 1, 3, 1), (1, 1, 2, 1), 'VALID')
        x = pad1(px); x = jax.nn.relu(x); x = conv(x)
        x = pad1(x); x = jax.nn.relu(x); x = conv(x)
        x = x + px
    x = x.squeeze((2, 3))                                          # (B, F)
    logits = x @ W_lin.T + b_lin
    logp = jax.nn.log_softmax(logits, axis=-1)
    loss = -jnp.mean(logp[jnp.arange(x.shape[0]), labels])
    return loss, logits


if __name__ == "__main__":
    B, L, E = 2, 16, 32          # L=16 -> heights 13 -> 6 -> 3 -> 1
    vocab, num_labels = 50, 2
    Fc = NUM_FILTERS

    key = jax.random.PRNGKey(0)
    ks = jax.random.split(key, 9)
    emb_table = jax.random.normal(ks[0], (vocab, E), jnp.float32)
    W_region = jax.random.normal(ks[1], (Fc, 1, 3, E), jnp.float32) / jnp.sqrt(3.0 * E)
    b_region = 0.1 * jax.random.normal(ks[2], (Fc,), jnp.float32)
    W_conv = jax.random.normal(ks[3], (Fc, Fc, 3, 1), jnp.float32) / jnp.sqrt(3.0 * Fc)
    b_conv = 0.1 * jax.random.normal(ks[4], (Fc,), jnp.float32)
    W_lin = jax.random.normal(ks[5], (num_labels, Fc), jnp.float32) / jnp.sqrt(1.0 * Fc)
    b_lin = 0.1 * jax.random.normal(ks[6], (num_labels,), jnp.float32)
    params = (W_region, b_region, W_conv, b_conv, W_lin, b_lin)

    input_ids = jax.random.randint(ks[7], (B, L), 0, vocab, dtype=jnp.int32)
    labels = jnp.array([0, 1], dtype=jnp.int32)

    loss, logits = jax.jit(dpcnn_forward, static_argnames=("num_labels",))(
        emb_table, input_ids, labels, params, num_labels=num_labels)
    jax.block_until_ready((loss, logits))

    # sanity check against a pure-JAX NCHW reference of the PyTorch module
    ref_loss, ref_logits = ref_forward(emb_table, input_ids, labels, params, num_labels)
    assert jnp.allclose(logits, ref_logits, rtol=2e-2, atol=2e-2), (logits, ref_logits)
    assert jnp.allclose(loss, ref_loss, rtol=2e-2, atol=2e-2), (loss, ref_loss)

    print("KERNEL_OK")
</pallas_src>

<mosaic_0001>
module attributes {stable_mosaic.version = 11 : i64} {
  func.func @dpcnn_kernel(%arg0: i32, %arg1: memref<1x16x128xf32, #tpu.memory_space<vmem>>, %arg2: memref<384x128xf32, #tpu.memory_space<vmem>>, %arg3: memref<1x128xf32, #tpu.memory_space<vmem>>, %arg4: memref<384x128xf32, #tpu.memory_space<vmem>>, %arg5: memref<1x128xf32, #tpu.memory_space<vmem>>, %arg6: memref<128x128xf32, #tpu.memory_space<vmem>>, %arg7: memref<1x128xf32, #tpu.memory_space<vmem>>, %arg8: memref<1x1x128xf32, #tpu.memory_space<vmem>>, %arg9: memref<1x1x1xf32, #tpu.memory_space<vmem>>, %arg10: memref<1x1x128xf32, #tpu.memory_space<vmem>>, %arg11: memref<32x128xf32, #tpu.memory_space<vmem>>) attributes {dimension_semantics = [#tpu.dimension_semantics<parallel>], iteration_bounds = array<i64: 2>, scalar_prefetch = 0 : i64, scratch_operands = 1 : i64, tpu.core_type = #tpu.core_type<tc>, window_params = [{transform_indices = @transform_0, window_bounds = array<i64: 1, 16, 128>}, {pipeline_mode = #tpu.pipeline_mode<synchronous>, transform_indices = @transform_1, window_bounds = array<i64: 384, 128>}, {pipeline_mode = #tpu.pipeline_mode<synchronous>, transform_indices = @transform_2, window_bounds = array<i64: 1, 128>}, {pipeline_mode = #tpu.pipeline_mode<synchronous>, transform_indices = @transform_3, window_bounds = array<i64: 384, 128>}, {pipeline_mode = #tpu.pipeline_mode<synchronous>, transform_indices = @transform_4, window_bounds = array<i64: 1, 128>}, {pipeline_mode = #tpu.pipeline_mode<synchronous>, transform_indices = @transform_5, window_bounds = array<i64: 128, 128>}, {pipeline_mode = #tpu.pipeline_mode<synchronous>, transform_indices = @transform_6, window_bounds = array<i64: 1, 128>}, {transform_indices = @transform_7, window_bounds = array<i64: 1, 1, 128>}, {transform_indices = @transform_8, window_bounds = array<i64: 1, 1, 1>}, {transform_indices = @transform_9, window_bounds = array<i64: 1, 1, 128>}]} {
    %c0 = arith.constant 0 : index
    %c0_0 = arith.constant 0 : index
    %c0_1 = arith.constant 0 : index
    %0 = vector.load %arg1[%c0, %c0_0, %c0_1] : memref<1x16x128xf32, #tpu.memory_space<vmem>>, vector<1x16x128xf32>
    %1 = vector.shape_cast %0 : vector<1x16x128xf32> to vector<16x128xf32>
    %c8 = arith.constant 8 : index
    %c0_2 = arith.constant 0 : index
    %2 = vector.load %arg11[%c8, %c0_2] : memref<32x128xf32, #tpu.memory_space<vmem>>, vector<16x128xf32>
    tpu.vector_store %arg11[%c8, %c0_2], %1 {strides = array<i32>} : memref<32x128xf32, #tpu.memory_space<vmem>>, vector<16x128xf32>,
    %c8_3 = arith.constant 8 : index
    %c0_4 = arith.constant 0 : index
    %3 = vector.load %arg11[%c8_3, %c0_4] : memref<32x128xf32, #tpu.memory_space<vmem>>, vector<14x128xf32>
    %c9 = arith.constant 9 : index
    %c0_5 = arith.constant 0 : index
    %4 = vector.load %arg11[%c9, %c0_5] : memref<32x128xf32, #tpu.memory_space<vmem>>, vector<14x128xf32>
    %c10 = arith.constant 10 : index
    %c0_6 = arith.constant 0 : index
    %5 = vector.load %arg11[%c10, %c0_6] : memref<32x128xf32, #tpu.memory_space<vmem>>, vector<14x128xf32>
    %6 = tpu.concatenate %3, %4, %5 in 1 : vector<14x128xf32>, vector<14x128xf32>, vector<14x128xf32> -> vector<14x384xf32>
    %c0_7 = arith.constant 0 : index
    %c0_8 = arith.constant 0 : index
    %7 = vector.load %arg2[%c0_7, %c0_8] : memref<384x128xf32, #tpu.memory_space<vmem>>, vector<384x128xf32>
    %cst = arith.constant dense<0.000000e+00> : vector<14x128xf32>
    %8 = tpu.matmul %6, %7, %cst {dimension_numbers = #tpu.dot_dimension_numbers<[1], [0], [0], [1], [0, 0, 1, 1], [], []>} : vector<14x384xf32>, vector<384x128xf32>, vector<14x128xf32> -> vector<14x128xf32>
    %c0_9 = arith.constant 0 : index
    %c0_10 = arith.constant 0 : index
    %9 = vector.load %arg3[%c0_9, %c0_10] : memref<1x128xf32, #tpu.memory_space<vmem>>, vector<1x128xf32>
    %10 = vector.broadcast %9 : vector<1x128xf32> to vector<14x128xf32>
    %11 = arith.addf %8, %10 : vector<14x128xf32>
    %cst_11 = arith.constant 0.000000e+00 : f32
    %12 = vector.broadcast %cst_11 : f32 to vector<14x128xf32>
    %13 = arith.maximumf %11, %12 : vector<14x128xf32>
    %cst_12 = arith.constant 0.000000e+00 : f32
    %14 = vector.broadcast %cst_12 : f32 to vector<1x128xf32>
    %c7 = arith.constant 7 : index
    %c0_13 = arith.constant 0 : index
    %15 = vector.load %arg11[%c7, %c0_13] : memref<32x128xf32, #tpu.memory_space<vmem>>, vector<1x128xf32>
    tpu.vector_store %arg11[%c7, %c0_13], %14 {strides = array<i32>} : memref<32x128xf32, #tpu.memory_space<vmem>>, vector<1x128xf32>,
    %c22 = arith.constant 22 : index
    %c0_14 = arith.constant 0 : index
    %16 = vector.load %arg11[%c22, %c0_14] : memref<32x128xf32, #tpu.memory_space<vmem>>, vector<1x128xf32>
    tpu.vector_store %arg11[%c22, %c0_14], %14 {strides = array<i32>} : memref<32x128xf32, #tpu.memory_space<vmem>>, vector<1x128xf32>,
    %c8_15 = arith.constant 8 : index
    %c0_16 = arith.constant 0 : index
    %17 = vector.load %arg11[%c8_15, %c0_16] : memref<32x128xf32, #tpu.memory_space<vmem>>, vector<14x128xf32>
    tpu.vector_store %arg11[%c8_15, %c0_16], %13 {strides = array<i32>} : memref<32x128xf32, #tpu.memory_space<vmem>>, vector<14x128xf32>,
    %c7_17 = arith.constant 7 : index
    %c0_18 = arith.constant 0 : index
    %18 = vector.load %arg11[%c7_17, %c0_18] : memref<32x128xf32, #tpu.memory_space<vmem>>, vector<14x128xf32>
    %c8_19 = arith.constant 8 : index
    %c0_20 = arith.constant 0 : index
    %19 = vector.load %arg11[%c8_19, %c0_20] : memref<32x128xf32, #tpu.memory_space<vmem>>, vector<14x128xf32>
    %c9_21 = arith.constant 9 : index
    %c0_22 = arith.constant 0 : index
    %20 = vector.load %arg11[%c9_21, %c0_22] : memref<32x128xf32, #tpu.memory_space<vmem>>, vector<14x128xf32>
    %21 = tpu.concatenate %18, %19, %20 in 1 : vector<14x128xf32>, vector<14x128xf32>, vector<14x128xf32> -> vector<14x384xf32>
    %c0_23 = arith.constant 0 : index
    %c0_24 = arith.constant 0 : index
    %22 = vector.load %arg4[%c0_23, %c0_24] : memref<384x128xf32, #tpu.memory_space<vmem>>, vector<384x128xf32>
    %cst_25 = arith.constant dense<0.000000e+00> : vector<14x128xf32>
    %23 = tpu.matmul %21, %22, %cst_25 {dimension_numbers = #tpu.dot_dimension_numbers<[1], [0], [0], [1], [0, 0, 1, 1], [], []>} : vector<14x384xf32>, vector<384x128xf32>, vector<14x128xf32> -> vector<14x128xf32>
    %c0_26 = arith.constant 0 : index
    %c0_27 = arith.constant 0 : index
    %24 = vector.load %arg5[%c0_26, %c0_27] : memref<1x128xf32, #tpu.memory_space<vmem>>, vector<1x128xf32>
    %25 = vector.broadcast %24 : vector<1x128xf32> to vector<14x128xf32>
    %26 = arith.addf %23, %25 : vector<14x128xf32>
    %cst_28 = arith.constant 0.000000e+00 : f32
    %27 = vector.broadcast %cst_28 : f32 to vector<14x128xf32>
    %28 = arith.maximumf %26, %27 : vector<14x128xf32>
    %cst_29 = arith.constant 0.000000e+00 : f32
    %29 = vector.broadcast %cst_29 : f32 to vector<1x128xf32>
    %c22_30 = arith.constant 22 : index
    %c0_31 = arith.constant 0 : index
    %30 = vector.load %arg11[%c22_30, %c0_31] : memref<32x128xf32, #tpu.memory_space<vmem>>, vector<1x128xf32>
    tpu.vector_store %arg11[%c22_30, %c0_31], %29 {strides = array<i32>} : memref<32x128xf32, #tpu.memory_space<vmem>>, vector<1x128xf32>,
    %c8_32 = arith.constant 8 : index
    %c0_33 = arith.constant 0 : index
    %31 = vector.load %arg11[%c8_32, %c0_33] : memref<32x128xf32, #tpu.memory_space<vmem>>, vector<14x128xf32>
    tpu.vector_store %arg11[%c8_32, %c0_33], %28 {strides = array<i32>} : memref<32x128xf32, #tpu.memory_space<vmem>>, vector<14x128xf32>,
    %c8_34 = arith.constant 8 : index
    %c0_35 = arith.constant 0 : index
    %32 = vector.load %arg11[%c8_34, %c0_35] : memref<32x128xf32, #tpu.memory_space<vmem>>, vector<13x128xf32>
    %c9_36 = arith.constant 9 : index
    %c0_37 = arith.constant 0 : index
    %33 = vector.load %arg11[%c9_36, %c0_37] : memref<32x128xf32, #tpu.memory_space<vmem>>, vector<13x128xf32>
    %c10_38 = arith.constant 10 : index
    %c0_39 = arith.constant 0 : index
    %34 = vector.load %arg11[%c10_38, %c0_39] : memref<32x128xf32, #tpu.memory_space<vmem>>, vector<13x128xf32>
    %35 = tpu.concatenate %32, %33, %34 in 1 : vector<13x128xf32>, vector<13x128xf32>, vector<13x128xf32> -> vector<13x384xf32>
    %c0_40 = arith.constant 0 : index
    %c0_41 = arith.constant 0 : index
    %36 = vector.load %arg4[%c0_40, %c0_41] : memref<384x128xf32, #tpu.memory_space<vmem>>, vector<384x128xf32>
    %cst_42 = arith.constant dense<0.000000e+00> : vector<13x128xf32>
    %37 = tpu.matmul %35, %36, %cst_42 {dimension_numbers = #tpu.dot_dimension_numbers<[1], [0], [0], [1], [0, 0, 1, 1], [], []>} : vector<13x384xf32>, vector<384x128xf32>, vector<13x128xf32> -> vector<13x128xf32>
    %c0_43 = arith.constant 0 : index
    %c0_44 = arith.constant 0 : index
    %38 = vector.load %arg5[%c0_43, %c0_44] : memref<1x128xf32, #tpu.memory_space<vmem>>, vector<1x128xf32>
    %39 = vector.broadcast %38 : vector<1x128xf32> to vector<13x128xf32>
    %40 = arith.addf %37, %39 : vector<13x128xf32>
    %cst_45 = arith.constant 0.000000e+00 : f32
    %41 = vector.broadcast %cst_45 : f32 to vector<1x128xf32>
    %c21 = arith.constant 21 : index
    %c0_46 = arith.constant 0 : index
    %42 = vector.load %arg11[%c21, %c0_46] : memref<32x128xf32, #tpu.memory_space<vmem>>, vector<1x128xf32>
    tpu.vector_store %arg11[%c21, %c0_46], %41 {strides = array<i32>} : memref<32x128xf32, #tpu.memory_space<vmem>>, vector<1x128xf32>,
    %c8_47 = arith.constant 8 : index
    %c0_48 = arith.constant 0 : index
    %43 = vector.load %arg11[%c8_47, %c0_48] : memref<32x128xf32, #tpu.memory_space<vmem>>, vector<13x128xf32>
    tpu.vector_store %arg11[%c8_47, %c0_48], %40 {strides = array<i32>} : memref<32x128xf32, #tpu.memory_space<vmem>>, vector<13x128xf32>,
    %c8_49 = arith.constant 8 : index
    %c0_50 = arith.constant 0 : index
    %44 = vector.load %arg11[%c8_49, %c0_50] : memref<32x128xf32, #tpu.memory_space<vmem>>, vector<12x128xf32>
    %c9_51 = arith.constant 9 : index
    %c0_52 = arith.constant 0 : index
    %45 = vector.load %arg11[%c9_51, %c0_52] : memref<32x128xf32, #tpu.memory_space<vmem>>, vector<12x128xf32>
    %46 = arith.maximumf %44, %45 : vector<12x128xf32>
    %c10_53 = arith.constant 10 : index
    %c0_54 = arith.constant 0 : index
    %47 = vector.load %arg11[%c10_53, %c0_54] : memref<32x128xf32, #tpu.memory_space<vmem>>, vector<12x128xf32>
    %48 = arith.maximumf %46, %47 : vector<12x128xf32>
    %49 = tpu.iota {dimensions = array<i32: 0>} : vector<6x12xi32>
    %50 = tpu.iota {dimensions = array<i32: 1>} : vector<6x12xi32>
    %c2_i32 = arith.constant 2 : i32
    %51 = vector.broadcast %c2_i32 : i32 to vector<6x12xi32>
    %52 = arith.muli %51, %49 : vector<6x12xi32>
    %53 = arith.cmpi eq, %50, %52 : vector<6x12xi32>
    %54 = arith.extui %53 : vector<6x12xi1> to vector<6x12xi32>
    %55 = arith.sitofp %54 : vector<6x12xi32> to vector<6x12xf32>
    %cst_55 = arith.constant dense<0.000000e+00> : vector<6x128xf32>
    %56 = tpu.matmul %55, %48, %cst_55 {dimension_numbers = #tpu.dot_dimension_numbers<[1], [0], [0], [1], [0, 0, 1, 1], [], []>} : vector<6x12xf32>, vector<12x128xf32>, vector<6x128xf32> -> vector<6x128xf32>
    %cst_56 = arith.constant 0.000000e+00 : f32
    %57 = vector.broadcast %cst_56 : f32 to vector<6x128xf32>
    %58 = arith.maximumf %56, %57 : vector<6x128xf32>
    %cst_57 = arith.constant 0.000000e+00 : f32
    %59 = vector.broadcast %cst_57 : f32 to vector<1x128xf32>
    %c7_58 = arith.constant 7 : index
    %c0_59 = arith.constant 0 : index
    %60 = vector.load %arg11[%c7_58, %c0_59] : memref<32x128xf32, #tpu.memory_space<vmem>>, vector<1x128xf32>
    tpu.vector_store %arg11[%c7_58, %c0_59], %59 {strides = array<i32>} : memref<32x128xf32, #tpu.memory_space<vmem>>, vector<1x128xf32>,
    %c14 = arith.constant 14 : index
    %c0_60 = arith.constant 0 : index
    %61 = vector.load %arg11[%c14, %c0_60] : memref<32x128xf32, #tpu.memory_space<vmem>>, vector<1x128xf32>
    tpu.vector_store %arg11[%c14, %c0_60], %59 {strides = array<i32>} : memref<32x128xf32, #tpu.memory_space<vmem>>, vector<1x128xf32>,
    %c8_61 = arith.constant 8 : index
    %c0_62 = arith.constant 0 : index
    %62 = vector.load %arg11[%c8_61, %c0_62] : memref<32x128xf32, #tpu.memory_space<vmem>>, vector<6x128xf32>
    tpu.vector_store %arg11[%c8_61, %c0_62], %58 {strides = array<i32>} : memref<32x128xf32, #tpu.memory_space<vmem>>, vector<6x128xf32>,
    %c7_63 = arith.constant 7 : index
    %c0_64 = arith.constant 0 : index
    %63 = vector.load %arg11[%c7_63, %c0_64] : memref<32x128xf32, #tpu.memory_space<vmem>>, vector<6x128xf32>
    %c8_65 = arith.constant 8 : index
    %c0_66 = arith.constant 0 : index
    %64 = vector.load %arg11[%c8_65, %c0_66] : memref<32x128xf32, #tpu.memory_space<vmem>>, vector<6x128xf32>
    %c9_67 = arith.constant 9 : index
    %c0_68 = arith.constant 0 : index
    %65 = vector.load %arg11[%c9_67, %c0_68] : memref<32x128xf32, #tpu.memory_space<vmem>>, vector<6x128xf32>
    %66 = tpu.concatenate %63, %64, %65 in 1 : vector<6x128xf32>, vector<6x128xf32>, vector<6x128xf32> -> vector<6x384xf32>
    %c0_69 = arith.constant 0 : index
    %c0_70 = arith.constant 0 : index
    %67 = vector.load %arg4[%c0_69, %c0_70] : memref<384x128xf32, #tpu.memory_space<vmem>>, vector<384x128xf32>
    %cst_71 = arith.constant dense<0.000000e+00> : vector<6x128xf32>
    %68 = tpu.matmul %66, %67, %cst_71 {dimension_numbers = #tpu.dot_dimension_numbers<[1], [0], [0], [1], [0, 0, 1, 1], [], []>} : vector<6x384xf32>, vector<384x128xf32>, vector<6x128xf32> -> vector<6x128xf32>
    %c0_72 = arith.constant 0 : index
    %c0_73 = arith.constant 0 : index
    %69 = vector.load %arg5[%c0_72, %c0_73] : memref<1x128xf32, #tpu.memory_space<vmem>>, vector<1x128xf32>
    %70 = vector.broadcast %69 : vector<1x128xf32> to vector<6x128xf32>
    %71 = arith.addf %68, %70 : vector<6x128xf32>
    %cst_74 = arith.constant 0.000000e+00 : f32
    %72 = vector.broadcast %cst_74 : f32 to vector<6x128xf32>
    %73 = arith.maximumf %71, %72 : vector<6x128xf32>
    %cst_75 = arith.constant 0.000000e+00 : f32
    %74 = vector.broadcast %cst_75 : f32 to vector<1x128xf32>
    %c7_76 = arith.constant 7 : index
    %c0_77 = arith.constant 0 : index
    %75 = vector.load %arg11[%c7_76, %c0_77] : memref<32x128xf32, #tpu.memory_space<vmem>>, vector<1x128xf32>
    tpu.vector_store %arg11[%c7_76, %c0_77], %74 {strides = array<i32>} : memref<32x128xf32, #tpu.memory_space<vmem>>, vector<1x128xf32>,
    %c14_78 = arith.constant 14 : index
    %c0_79 = arith.constant 0 : index
    %76 = vector.load %arg11[%c14_78, %c0_79] : memref<32x128xf32, #tpu.memory_space<vmem>>, vector<1x128xf32>
    tpu.vector_store %arg11[%c14_78, %c0_79], %74 {strides = array<i32>} : memref<32x128xf32, #tpu.memory_space<vmem>>, vector<1x128xf32>,
    %c8_80 = arith.constant 8 : index
    %c0_81 = arith.constant 0 : index
    %77 = vector.load %arg11[%c8_80, %c0_81] : memref<32x128xf32, #tpu.memory_space<vmem>>, vector<6x128xf32>
    tpu.vector_store %arg11[%c8_80, %c0_81], %73 {strides = array<i32>} : memref<32x128xf32, #tpu.memory_space<vmem>>, vector<6x128xf32>,
    %c7_82 = arith.constant 7 : index
    %c0_83 = arith.constant 0 : index
    %78 = vector.load %arg11[%c7_82, %c0_83] : memref<32x128xf32, #tpu.memory_space<vmem>>, vector<6x128xf32>
    %c8_84 = arith.constant 8 : index
    %c0_85 = arith.constant 0 : index
    %79 = vector.load %arg11[%c8_84, %c0_85] : memref<32x128xf32, #tpu.memory_space<vmem>>, vector<6x128xf32>
    %c9_86 = arith.constant 9 : index
    %c0_87 = arith.constant 0 : index
    %80 = vector.load %arg11[%c9_86, %c0_87] : memref<32x128xf32, #tpu.memory_space<vmem>>, vector<6x128xf32>
    %81 = tpu.concatenate %78, %79, %80 in 1 : vector<6x128xf32>, vector<6x128xf32>, vector<6x128xf32> -> vector<6x384xf32>
    %c0_88 = arith.constant 0 : index
    %c0_89 = arith.constant 0 : index
    %82 = vector.load %arg4[%c0_88, %c0_89] : memref<384x128xf32, #tpu.memory_space<vmem>>, vector<384x128xf32>
    %cst_90 = arith.constant dense<0.000000e+00> : vector<6x128xf32>
    %83 = tpu.matmul %81, %82, %cst_90 {dimension_numbers = #tpu.dot_dimension_numbers<[1], [0], [0], [1], [0, 0, 1, 1], [], []>} : vector<6x384xf32>, vector<384x128xf32>, vector<6x128xf32> -> vector<6x128xf32>
    %c0_91 = arith.constant 0 : index
    %c0_92 = arith.constant 0 : index
    %84 = vector.load %arg5[%c0_91, %c0_92] : memref<1x128xf32, #tpu.memory_space<vmem>>, vector<1x128xf32>
    %85 = vector.broadcast %84 : vector<1x128xf32> to vector<6x128xf32>
    %86 = arith.addf %83, %85 : vector<6x128xf32>
    %87 = arith.addf %86, %56 : vector<6x128xf32>
    %cst_93 = arith.constant 0.000000e+00 : f32
    %88 = vector.broadcast %cst_93 : f32 to vector<1x128xf32>
    %c14_94 = arith.constant 14 : index
    %c0_95 = arith.constant 0 : index
    %89 = vector.load %arg11[%c14_94, %c0_95] : memref<32x128xf32, #tpu.memory_space<vmem>>, vector<1x128xf32>
    tpu.vector_store %arg11[%c14_94, %c0_95], %88 {strides = array<i32>} : memref<32x128xf32, #tpu.memory_space<vmem>>, vector<1x128xf32>,
    %c8_96 = arith.constant 8 : index
    %c0_97 = arith.constant 0 : index
    %90 = vector.load %arg11[%c8_96, %c0_97] : memref<32x128xf32, #tpu.memory_space<vmem>>, vector<6x128xf32>
    tpu.vector_store %arg11[%c8_96, %c0_97], %87 {strides = array<i32>} : memref<32x128xf32, #tpu.memory_space<vmem>>, vector<6x128xf32>,
    %c8_98 = arith.constant 8 : index
    %c0_99 = arith.constant 0 : index
    %91 = vector.load %arg11[%c8_98, %c0_99] : memref<32x128xf32, #tpu.memory_space<vmem>>, vector<5x128xf32>
    %c9_100 = arith.constant 9 : index
    %c0_101 = arith.constant 0 : index
    %92 = vector.load %arg11[%c9_100, %c0_101] : memref<32x128xf32, #tpu.memory_space<vmem>>, vector<5x128xf32>
    %93 = arith.maximumf %91, %92 : vector<5x128xf32>
    %c10_102 = arith.constant 10 : index
    %c0_103 = arith.constant 0 : index
    %94 = vector.load %arg11[%c10_102, %c0_103] : memref<32x128xf32, #tpu.memory_space<vmem>>, vector<5x128xf32>
    %95 = arith.maximumf %93, %94 : vector<5x128xf32>
    %96 = tpu.iota {dimensions = array<i32: 0>} : vector<3x5xi32>
    %97 = tpu.iota {dimensions = array<i32: 1>} : vector<3x5xi32>
    %c2_i32_104 = arith.constant 2 : i32
    %98 = vector.broadcast %c2_i32_104 : i32 to vector<3x5xi32>
    %99 = arith.muli %98, %96 : vector<3x5xi32>
    %100 = arith.cmpi eq, %97, %99 : vector<3x5xi32>
    %101 = arith.extui %100 : vector<3x5xi1> to vector<3x5xi32>
    %102 = arith.sitofp %101 : vector<3x5xi32> to vector<3x5xf32>
    %cst_105 = arith.constant dense<0.000000e+00> : vector<3x128xf32>
    %103 = tpu.matmul %102, %95, %cst_105 {dimension_numbers = #tpu.dot_dimension_numbers<[1], [0], [0], [1], [0, 0, 1, 1], [], []>} : vector<3x5xf32>, vector<5x128xf32>, vector<3x128xf32> -> vector<3x128xf32>
    %cst_106 = arith.constant 0.000000e+00 : f32
    %104 = vector.broadcast %cst_106 : f32 to vector<3x128xf32>
    %105 = arith.maximumf %103, %104 : vector<3x128xf32>
    %cst_107 = arith.constant 0.000000e+00 : f32
    %106 = vector.broadcast %cst_107 : f32 to vector<1x128xf32>
    %c7_108 = arith.constant 7 : index
    %c0_109 = arith.constant 0 : index
    %107 = vector.load %arg11[%c7_108, %c0_109] : memref<32x128xf32, #tpu.memory_space<vmem>>, vector<1x128xf32>
    tpu.vector_store %arg11[%c7_108, %c0_109], %106 {strides = array<i32>} : memref<32x128xf32, #tpu.memory_space<vmem>>, vector<1x128xf32>,
    %c11 = arith.constant 11 : index
    %c0_110 = arith.constant 0 : index
    %108 = vector.load %arg11[%c11, %c0_110] : memref<32x128xf32, #tpu.memory_space<vmem>>, vector<1x128xf32>
    tpu.vector_store %arg11[%c11, %c0_110], %106 {strides = array<i32>} : memref<32x128xf32, #tpu.memory_space<vmem>>, vector<1x128xf32>,
    %c8_111 = arith.constant 8 : index
    %c0_112 = arith.constant 0 : index
    %109 = vector.load %arg11[%c8_111, %c0_112] : memref<32x128xf32, #tpu.memory_space<vmem>>, vector<3x128xf32>
    tpu.vector_store %arg11[%c8_111, %c0_112], %105 {strides = array<i32>} : memref<32x128xf32, #tpu.memory_space<vmem>>, vector<3x128xf32>,
    %c7_113 = arith.constant 7 : index
    %c0_114 = arith.constant 0 : index
    %110 = vector.load %arg11[%c7_113, %c0_114] : memref<32x128xf32, #tpu.memory_space<vmem>>, vector<3x128xf32>
    %c8_115 = arith.constant 8 : index
    %c0_116 = arith.constant 0 : index
    %111 = vector.load %arg11[%c8_115, %c0_116] : memref<32x128xf32, #tpu.memory_space<vmem>>, vector<3x128xf32>
    %c9_117 = arith.constant 9 : index
    %c0_118 = arith.constant 0 : index
    %112 = vector.load %arg11[%c9_117, %c0_118] : memref<32x128xf32, #tpu.memory_space<vmem>>, vector<3x128xf32>
    %113 = tpu.concatenate %110, %111, %112 in 1 : vector<3x128xf32>, vector<3x128xf32>, vector<3x128xf32> -> vector<3x384xf32>
    %c0_119 = arith.constant 0 : index
    %c0_120 = arith.constant 0 : index
    %114 = vector.load %arg4[%c0_119, %c0_120] : memref<384x128xf32, #tpu.memory_space<vmem>>, vector<384x128xf32>
    %cst_121 = arith.constant dense<0.000000e+00> : vector<3x128xf32>
    %115 = tpu.matmul %113, %114, %cst_121 {dimension_numbers = #tpu.dot_dimension_numbers<[1], [0], [0], [1], [0, 0, 1, 1], [], []>} : vector<3x384xf32>, vector<384x128xf32>, vector<3x128xf32> -> vector<3x128xf32>
    %c0_122 = arith.constant 0 : index
    %c0_123 = arith.constant 0 : index
    %116 = vector.load %arg5[%c0_122, %c0_123] : memref<1x128xf32, #tpu.memory_space<vmem>>, vector<1x128xf32>
    %117 = vector.broadcast %116 : vector<1x128xf32> to vector<3x128xf32>
    %118 = arith.addf %115, %117 : vector<3x128xf32>
    %cst_124 = arith.constant 0.000000e+00 : f32
    %119 = vector.broadcast %cst_124 : f32 to vector<3x128xf32>
    %120 = arith.maximumf %118, %119 : vector<3x128xf32>
    %cst_125 = arith.constant 0.000000e+00 : f32
    %121 = vector.broadcast %cst_125 : f32 to vector<1x128xf32>
    %c7_126 = arith.constant 7 : index
    %c0_127 = arith.constant 0 : index
    %122 = vector.load %arg11[%c7_126, %c0_127] : memref<32x128xf32, #tpu.memory_space<vmem>>, vector<1x128xf32>
    tpu.vector_store %arg11[%c7_126, %c0_127], %121 {strides = array<i32>} : memref<32x128xf32, #tpu.memory_space<vmem>>, vector<1x128xf32>,
    %c11_128 = arith.constant 11 : index
    %c0_129 = arith.constant 0 : index
    %123 = vector.load %arg11[%c11_128, %c0_129] : memref<32x128xf32, #tpu.memory_space<vmem>>, vector<1x128xf32>
    tpu.vector_store %arg11[%c11_128, %c0_129], %121 {strides = array<i32>} : memref<32x128xf32, #tpu.memory_space<vmem>>, vector<1x128xf32>,
    %c8_130 = arith.constant 8 : index
    %c0_131 = arith.constant 0 : index
    %124 = vector.load %arg11[%c8_130, %c0_131] : memref<32x128xf32, #tpu.memory_space<vmem>>, vector<3x128xf32>
    tpu.vector_store %arg11[%c8_130, %c0_131], %120 {strides = array<i32>} : memref<32x128xf32, #tpu.memory_space<vmem>>, vector<3x128xf32>,
    %c7_132 = arith.constant 7 : index
    %c0_133 = arith.constant 0 : index
    %125 = vector.load %arg11[%c7_132, %c0_133] : memref<32x128xf32, #tpu.memory_space<vmem>>, vector<3x128xf32>
    %c8_134 = arith.constant 8 : index
    %c0_135 = arith.constant 0 : index
    %126 = vector.load %arg11[%c8_134, %c0_135] : memref<32x128xf32, #tpu.memory_space<vmem>>, vector<3x128xf32>
    %c9_136 = arith.constant 9 : index
    %c0_137 = arith.constant 0 : index
    %127 = vector.load %arg11[%c9_136, %c0_137] : memref<32x128xf32, #tpu.memory_space<vmem>>, vector<3x128xf32>
    %128 = tpu.concatenate %125, %126, %127 in 1 : vector<3x128xf32>, vector<3x128xf32>, vector<3x128xf32> -> vector<3x384xf32>
    %c0_138 = arith.constant 0 : index
    %c0_139 = arith.constant 0 : index
    %129 = vector.load %arg4[%c0_138, %c0_139] : memref<384x128xf32, #tpu.memory_space<vmem>>, vector<384x128xf32>
    %cst_140 = arith.constant dense<0.000000e+00> : vector<3x128xf32>
    %130 = tpu.matmul %128, %129, %cst_140 {dimension_numbers = #tpu.dot_dimension_numbers<[1], [0], [0], [1], [0, 0, 1, 1], [], []>} : vector<3x384xf32>, vector<384x128xf32>, vector<3x128xf32> -> vector<3x128xf32>
    %c0_141 = arith.constant 0 : index
    %c0_142 = arith.constant 0 : index
    %131 = vector.load %arg5[%c0_141, %c0_142] : memref<1x128xf32, #tpu.memory_space<vmem>>, vector<1x128xf32>
    %132 = vector.broadcast %131 : vector<1x128xf32> to vector<3x128xf32>
    %133 = arith.addf %130, %132 : vector<3x128xf32>
    %134 = arith.addf %133, %103 : vector<3x128xf32>
    %cst_143 = arith.constant 0.000000e+00 : f32
    %135 = vector.broadcast %cst_143 : f32 to vector<1x128xf32>
    %c11_144 = arith.constant 11 : index
    %c0_145 = arith.constant 0 : index
    %136 = vector.load %arg11[%c11_144, %c0_145] : memref<32x128xf32, #tpu.memory_space<vmem>>, vector<1x128xf32>
    tpu.vector_store %arg11[%c11_144, %c0_145], %135 {strides = array<i32>} : memref<32x128xf32, #tpu.memory_space<vmem>>, vector<1x128xf32>,
    %c8_146 = arith.constant 8 : index
    %c0_147 = arith.constant 0 : index
    %137 = vector.load %arg11[%c8_146, %c0_147] : memref<32x128xf32, #tpu.memory_space<vmem>>, vector<3x128xf32>
    tpu.vector_store %arg11[%c8_146, %c0_147], %134 {strides = array<i32>} : memref<32x128xf32, #tpu.memory_space<vmem>>, vector<3x128xf32>,
    %c8_148 = arith.constant 8 : index
    %c0_149 = arith.constant 0 : index
    %138 = vector.load %arg11[%c8_148, %c0_149] : memref<32x128xf32, #tpu.memory_space<vmem>>, vector<2x128xf32>
    %c9_150 = arith.constant 9 : index
    %c0_151 = arith.constant 0 : index
    %139 = vector.load %arg11[%c9_150, %c0_151] : memref<32x128xf32, #tpu.memory_space<vmem>>, vector<2x128xf32>
    %140 = arith.maximumf %138, %139 : vector<2x128xf32>
    %c10_152 = arith.constant 10 : index
    %c0_153 = arith.constant 0 : index
    %141 = vector.load %arg11[%c10_152, %c0_153] : memref<32x128xf32, #tpu.memory_space<vmem>>, vector<2x128xf32>
    %142 = arith.maximumf %140, %141 : vector<2x128xf32>
    %143 = vector.extract_strided_slice %142 {offsets = [0, 0], sizes = [1, 128], strides = [1, 1]} : vector<2x128xf32> to vector<1x128xf32>
    %cst_154 = arith.constant 0.000000e+00 : f32
    %144 = vector.broadcast %cst_154 : f32 to vector<1x128xf32>
    %145 = arith.maximumf %143, %144 : vector<1x128xf32>
    %cst_155 = arith.constant 0.000000e+00 : f32
    %146 = vector.broadcast %cst_155 : f32 to vector<1x128xf32>
    %c7_156 = arith.constant 7 : index
    %c0_157 = arith.constant 0 : index
    %147 = vector.load %arg11[%c7_156, %c0_157] : memref<32x128xf32, #tpu.memory_space<vmem>>, vector<1x128xf32>
    tpu.vector_store %arg11[%c7_156, %c0_157], %146 {strides = array<i32>} : memref<32x128xf32, #tpu.memory_space<vmem>>, vector<1x128xf32>,
    %c9_158 = arith.constant 9 : index
    %c0_159 = arith.constant 0 : index
    %148 = vector.load %arg11[%c9_158, %c0_159] : memref<32x128xf32, #tpu.memory_space<vmem>>, vector<1x128xf32>
    tpu.vector_store %arg11[%c9_158, %c0_159], %146 {strides = array<i32>} : memref<32x128xf32, #tpu.memory_space<vmem>>, vector<1x128xf32>,
    %c8_160 = arith.constant 8 : index
    %c0_161 = arith.constant 0 : index
    %149 = vector.load %arg11[%c8_160, %c0_161] : memref<32x128xf32, #tpu.memory_space<vmem>>, vector<1x128xf32>
    tpu.vector_store %arg11[%c8_160, %c0_161], %145 {strides = array<i32>} : memref<32x128xf32, #tpu.memory_space<vmem>>, vector<1x128xf32>,
    %c7_162 = arith.constant 7 : index
    %c0_163 = arith.constant 0 : index
    %150 = vector.load %arg11[%c7_162, %c0_163] : memref<32x128xf32, #tpu.memory_space<vmem>>, vector<1x128xf32>
    %c8_164 = arith.constant 8 : index
    %c0_165 = arith.constant 0 : index
    %151 = vector.load %arg11[%c8_164, %c0_165] : memref<32x128xf32, #tpu.memory_space<vmem>>, vector<1x128xf32>
    %c9_166 = arith.constant 9 : index
    %c0_167 = arith.constant 0 : index
    %152 = vector.load %arg11[%c9_166, %c0_167] : memref<32x128xf32, #tpu.memory_space<vmem>>, vector<1x128xf32>
    %153 = tpu.concatenate %150, %151, %152 in 1 : vector<1x128xf32>, vector<1x128xf32>, vector<1x128xf32> -> vector<1x384xf32>
    %c0_168 = arith.constant 0 : index
    %c0_169 = arith.constant 0 : index
    %154 = vector.load %arg4[%c0_168, %c0_169] : memref<384x128xf32, #tpu.memory_space<vmem>>, vector<384x128xf32>
    %cst_170 = arith.constant dense<0.000000e+00> : vector<1x128xf32>
    %155 = tpu.matmul %153, %154, %cst_170 {dimension_numbers = #tpu.dot_dimension_numbers<[1], [0], [0], [1], [0, 0, 1, 1], [], []>} : vector<1x384xf32>, vector<384x128xf32>, vector<1x128xf32> -> vector<1x128xf32>
    %c0_171 = arith.constant 0 : index
    %c0_172 = arith.constant 0 : index
    %156 = vector.load %arg5[%c0_171, %c0_172] : memref<1x128xf32, #tpu.memory_space<vmem>>, vector<1x128xf32>
    %157 = arith.addf %155, %156 : vector<1x128xf32>
    %cst_173 = arith.constant 0.000000e+00 : f32
    %158 = vector.broadcast %cst_173 : f32 to vector<1x128xf32>
    %159 = arith.maximumf %157, %158 : vector<1x128xf32>
    %cst_174 = arith.constant 0.000000e+00 : f32
    %160 = vector.broadcast %cst_174 : f32 to vector<1x128xf32>
    %c7_175 = arith.constant 7 : index
    %c0_176 = arith.constant 0 : index
    %161 = vector.load %arg11[%c7_175, %c0_176] : memref<32x128xf32, #tpu.memory_space<vmem>>, vector<1x128xf32>
    tpu.vector_store %arg11[%c7_175, %c0_176], %160 {strides = array<i32>} : memref<32x128xf32, #tpu.memory_space<vmem>>, vector<1x128xf32>,
    %c9_177 = arith.constant 9 : index
    %c0_178 = arith.constant 0 : index
    %162 = vector.load %arg11[%c9_177, %c0_178] : memref<32x128xf32, #tpu.memory_space<vmem>>, vector<1x128xf32>
    tpu.vector_store %arg11[%c9_177, %c0_178], %160 {strides = array<i32>} : memref<32x128xf32, #tpu.memory_space<vmem>>, vector<1x128xf32>,
    %c8_179 = arith.constant 8 : index
    %c0_180 = arith.constant 0 : index
    %163 = vector.load %arg11[%c8_179, %c0_180] : memref<32x128xf32, #tpu.memory_space<vmem>>, vector<1x128xf32>
    tpu.vector_store %arg11[%c8_179, %c0_180], %159 {strides = array<i32>} : memref<32x128xf32, #tpu.memory_space<vmem>>, vector<1x128xf32>,
    %c7_181 = arith.constant 7 : index
    %c0_182 = arith.constant 0 : index
    %164 = vector.load %arg11[%c7_181, %c0_182] : memref<32x128xf32, #tpu.memory_space<vmem>>, vector<1x128xf32>
    %c8_183 = arith.constant 8 : index
    %c0_184 = arith.constant 0 : index
    %165 = vector.load %arg11[%c8_183, %c0_184] : memref<32x128xf32, #tpu.memory_space<vmem>>, vector<1x128xf32>
    %c9_185 = arith.constant 9 : index
    %c0_186 = arith.constant 0 : index
    %166 = vector.load %arg11[%c9_185, %c0_186] : memref<32x128xf32, #tpu.memory_space<vmem>>, vector<1x128xf32>
    %167 = tpu.concatenate %164, %165, %166 in 1 : vector<1x128xf32>, vector<1x128xf32>, vector<1x128xf32> -> vector<1x384xf32>
    %c0_187 = arith.constant 0 : index
    %c0_188 = arith.constant 0 : index
    %168 = vector.load %arg4[%c0_187, %c0_188] : memref<384x128xf32, #tpu.memory_space<vmem>>, vector<384x128xf32>
    %cst_189 = arith.constant dense<0.000000e+00> : vector<1x128xf32>
    %169 = tpu.matmul %167, %168, %cst_189 {dimension_numbers = #tpu.dot_dimension_numbers<[1], [0], [0], [1], [0, 0, 1, 1], [], []>} : vector<1x384xf32>, vector<384x128xf32>, vector<1x128xf32> -> vector<1x128xf32>
    %c0_190 = arith.constant 0 : index
    %c0_191 = arith.constant 0 : index
    %170 = vector.load %arg5[%c0_190, %c0_191] : memref<1x128xf32, #tpu.memory_space<vmem>>, vector<1x128xf32>
    %171 = arith.addf %169, %170 : vector<1x128xf32>
    %172 = arith.addf %171, %143 : vector<1x128xf32>
    %c0_192 = arith.constant 0 : index
    %c0_193 = arith.constant 0 : index
    %173 = vector.load %arg6[%c0_192, %c0_193] : memref<128x128xf32, #tpu.memory_space<vmem>>, vector<128x128xf32>
    %cst_194 = arith.constant dense<0.000000e+00> : vector<1x128xf32>
    %174 = tpu.matmul %172, %173, %cst_194 {dimension_numbers = #tpu.dot_dimension_numbers<[1], [0], [0], [1], [0, 0, 1, 1], [], []>} : vector<1x128xf32>, vector<128x128xf32>, vector<1x128xf32> -> vector<1x128xf32>
    %c0_195 = arith.constant 0 : index
    %c0_196 = arith.constant 0 : index
    %175 = vector.load %arg7[%c0_195, %c0_196] : memref<1x128xf32, #tpu.memory_space<vmem>>, vector<1x128xf32>
    %176 = arith.addf %174, %175 : vector<1x128xf32>
    %177 = vector.shape_cast %176 : vector<1x128xf32> to vector<1x1x128xf32>
    %c0_197 = arith.constant 0 : index
    %c0_198 = arith.constant 0 : index
    %c0_199 = arith.constant 0 : index
    %178 = vector.load %arg10[%c0_197, %c0_198, %c0_199] : memref<1x1x128xf32, #tpu.memory_space<vmem>>, vector<1x1x128xf32>
    tpu.vector_store %arg10[%c0_197, %c0_198, %c0_199], %177 {strides = array<i32>} : memref<1x1x128xf32, #tpu.memory_space<vmem>>, vector<1x1x128xf32>,
    %179 = tpu.iota {dimensions = array<i32: 1>} : vector<1x128xi32>
    %c2_i32_200 = arith.constant 2 : i32
    %180 = vector.broadcast %c2_i32_200 : i32 to vector<1x128xi32>
    %181 = arith.cmpi slt, %179, %180 : vector<1x128xi32>
    %cst_201 = arith.constant -1.000000e+30 : f32
    %182 = vector.broadcast %cst_201 : f32 to vector<1x128xf32>
    %183 = arith.select %181, %176, %182 : vector<1x128xi1>, vector<1x128xf32>
    %cst_202 = arith.constant dense<0xFF800000> : vector<1xf32>
    %184 = vector.multi_reduction <maximumf>, %183, %cst_202 [1] : vector<1x128xf32> to vector<1xf32>
    %185 = vector.shape_cast %184 : vector<1xf32> to vector<1x1xf32>
    %186 = vector.broadcast %185 : vector<1x1xf32> to vector<1x128xf32>
    %187 = arith.subf %183, %186 : vector<1x128xf32>
    %188 = math.exp %187 : vector<1x128xf32>
    %cst_203 = arith.constant dense<0.000000e+00> : vector<1xf32>
    %189 = vector.multi_reduction <add>, %188, %cst_203 [1] : vector<1x128xf32> to vector<1xf32>
    %190 = vector.shape_cast %189 : vector<1xf32> to vector<1x1xf32>
    %191 = math.log %190 : vector<1x1xf32>
    %192 = vector.broadcast %191 : vector<1x1xf32> to vector<1x128xf32>
    %193 = arith.subf %187, %192 : vector<1x128xf32>
    %c0_204 = arith.constant 0 : index
    %c0_205 = arith.constant 0 : index
    %c0_206 = arith.constant 0 : index
    %194 = vector.load %arg8[%c0_204, %c0_205, %c0_206] : memref<1x1x128xf32, #tpu.memory_space<vmem>>, vector<1x1x128xf32>
    %195 = vector.shape_cast %194 : vector<1x1x128xf32> to vector<1x128xf32>
    %196 = arith.mulf %195, %193 : vector<1x128xf32>
    %cst_207 = arith.constant dense<0.000000e+00> : vector<1xf32>
    %197 = vector.multi_reduction <add>, %196, %cst_207 [1] : vector<1x128xf32> to vector<1xf32>
    %198 = vector.shape_cast %197 : vector<1xf32> to vector<1x1xf32>
    %cst_208 = arith.constant 0.000000e+00 : f32
    %199 = vector.broadcast %cst_208 : f32 to vector<1x1xf32>
    %200 = arith.subf %199, %198 : vector<1x1xf32>
    %201 = vector.shape_cast %200 : vector<1x1xf32> to vector<1x1x1xf32>
    %c0_209 = arith.constant 0 : index
    %c0_210 = arith.constant 0 : index
    %c0_211 = arith.constant 0 : index
    %202 = vector.load %arg9[%c0_209, %c0_210, %c0_211] : memref<1x1x1xf32, #tpu.memory_space<vmem>>, vector<1x1x1xf32>
    tpu.vector_store %arg9[%c0_209, %c0_210, %c0_211], %201 {strides = array<i32>} : memref<1x1x1xf32, #tpu.memory_space<vmem>>, vector<1x1x1xf32>,
    return
  }
  func.func @transform_0(%arg0: i32) -> (i32, i32, i32) {
    %c0_i32 = arith.constant 0 : i32
    %c0_i32_0 = arith.constant 0 : i32
    %c0_i32_1 = arith.constant 0 : i32
    return %arg0, %c0_i32, %c0_i32_0 : i32, i32, i32
  }
  func.func @transform_1(%arg0: i32) -> (i32, i32) {
    %c0_i32 = arith.constant 0 : i32
    %c0_i32_0 = arith.constant 0 : i32
    %c0_i32_1 = arith.constant 0 : i32
    return %c0_i32, %c0_i32_0 : i32, i32
  }
  func.func @transform_2(%arg0: i32) -> (i32, i32) {
    %c0_i32 = arith.constant 0 : i32
    %c0_i32_0 = arith.constant 0 : i32
    %c0_i32_1 = arith.constant 0 : i32
    return %c0_i32, %c0_i32_0 : i32, i32
  }
  func.func @transform_3(%arg0: i32) -> (i32, i32) {
    %c0_i32 = arith.constant 0 : i32
    %c0_i32_0 = arith.constant 0 : i32
    %c0_i32_1 = arith.constant 0 : i32
    return %c0_i32, %c0_i32_0 : i32, i32
  }
  func.func @transform_4(%arg0: i32) -> (i32, i32) {
    %c0_i32 = arith.constant 0 : i32
    %c0_i32_0 = arith.constant 0 : i32
    %c0_i32_1 = arith.constant 0 : i32
    return %c0_i32, %c0_i32_0 : i32, i32
  }
  func.func @transform_5(%arg0: i32) -> (i32, i32) {
    %c0_i32 = arith.constant 0 : i32
    %c0_i32_0 = arith.constant 0 : i32
    %c0_i32_1 = arith.constant 0 : i32
    return %c0_i32, %c0_i32_0 : i32, i32
  }
  func.func @transform_6(%arg0: i32) -> (i32, i32) {
    %c0_i32 = arith.constant 0 : i32
    %c0_i32_0 = arith.constant 0 : i32
    %c0_i32_1 = arith.constant 0 : i32
    return %c0_i32, %c0_i32_0 : i32, i32
  }
  func.func @transform_7(%arg0: i32) -> (i32, i32, i32) {
    %c0_i32 = arith.constant 0 : i32
    %c0_i32_0 = arith.constant 0 : i32
    %c0_i32_1 = arith.constant 0 : i32
    return %arg0, %c0_i32, %c0_i32_0 : i32, i32, i32
  }
  func.func @transform_8(%arg0: i32) -> (i32, i32, i32) {
    %c0_i32 = arith.constant 0 : i32
    %c0_i32_0 = arith.constant 0 : i32
    %c0_i32_1 = arith.constant 0 : i32
    return %arg0, %c0_i32, %c0_i32_0 : i32, i32, i32
  }
  func.func @transform_9(%arg0: i32) -> (i32, i32, i32) {
    %c0_i32 = arith.constant 0 : i32
    %c0_i32_0 = arith.constant 0 : i32
    %c0_i32_1 = arith.constant 0 : i32
    return %arg0, %c0_i32, %c0_i32_0 : i32, i32, i32
  }
}

</mosaic_0001>

<llo_original>
// kernel: dpcnn_forward.1
$region0: #{dpcnn_forward.1}
  #allocation0 [shape = 'u32[]', space=smem, size = 0x4, offset = 0x4, fixed_abs, tag = 'smem constant byte address 0x4 - core index']
  #allocation1 [shape = 'u32[72,128]{1,0:T(1,128)}', space=vmem, size = 0x9000, scoped, tag = 'internal scratch']
  #allocation2 [shape = 'f32[32,128]{1,0:T(8,128)}', space=vmem, size = 0x4000, scoped, tag = 'scratch operand']
  %s0 = inlined_call_operand.vmem [shape: f32[2,16,128], index: 0, kind: input, shape index: {}]
  %s1 = inlined_call_operand.vmem [shape: f32[384,128], index: 1, kind: input, shape index: {}]
  %s2 = inlined_call_operand.vmem [shape: f32[1,128], index: 2, kind: input, shape index: {}]
  %s3 = inlined_call_operand.vmem [shape: f32[384,128], index: 3, kind: input, shape index: {}]
  %s4 = inlined_call_operand.vmem [shape: f32[1,128], index: 4, kind: input, shape index: {}]
  %s5 = inlined_call_operand.vmem [shape: f32[128,128], index: 5, kind: input, shape index: {}]
  %s6 = inlined_call_operand.vmem [shape: f32[1,128], index: 6, kind: input, shape index: {}]
  %s7 = inlined_call_operand.vmem [shape: f32[2,1,128], index: 7, kind: input, shape index: {}]
  %s8 = inlined_call_operand.vmem [shape: f32[2,1,1], index: 8, kind: output, shape index: {0}]
  %s9 = inlined_call_operand.hbm [shape: f32[2,1,128], index: 9, kind: output, shape index: {1}]
  %10 = xla_tuple %s8, %s9
  %s11 = sld [smem:[#allocation0]]
  $region73: #{dpcnn_forward.1} parent=0
    _
  %s13 = ssub.s32 1, %s11
  %s14 = scalar_select 0, %s13, %s11
  $region1: #{dpcnn_forward.1} parent=0
    #allocation3 [shape = 'u8[1024]{0}', space=vmem, size = 0x400, scoped, tag = 'output window, operand 1']
    #allocation4 [shape = 's32[2]{0}', space=sflag, size = 0x8, scoped, tag = 'scoped memory for dpcnn_forward.1']
    %15 = vsyncpa [#allocation4], 0
    %s16 = scalar_lea.sflag [#allocation4], 1
    %17 = vsyncpa %s16, 0
    loop: start=0, step=1, limit=4
    $region2: #{dpcnn_forward.1} parent=1 // loop_pre_header
      _
    $region3: #{dpcnn_forward.1} parent=1 // loop_header
      %s19 = sphi 0, %s23
      %p20 = scmp.ge.s32.totalorder %s19, 4
      %s29 = sphi 0, %s31
      %s32 = sphi 0, %s29
      %s33 = sphi 0, %s32
      %s49 = sphi 0, %s33
      %s53 = sphi 0, %s53
      %s55 = sphi 0, %s53
      %s56 = sphi 0, %s55
      %s70 = sphi 0, %s56
      %s74 = sphi 0, %s74
      %s76 = sphi 0, %s74
      %s77 = sphi 0, %s76
      %s91 = sphi 0, %s77
      %s95 = sphi 0, %s95
      %s97 = sphi 0, %s95
      %s98 = sphi 0, %s97
      %s112 = sphi 0, %s98
      %s116 = sphi 0, %s116
      %s118 = sphi 0, %s116
      %s119 = sphi 0, %s118
      %s133 = sphi 0, %s119
      %s137 = sphi 0, %s137
      %s139 = sphi 0, %s137
      %s140 = sphi 0, %s139
      %s154 = sphi 0, %s140
      %s158 = sphi 0, %s158
      %s160 = sphi 0, %s158
      %s161 = sphi 0, %s160
      %s175 = sphi 0, %s161
      %s181 = sphi 0, %s183
      %s184 = sphi 0, %s181
      %s185 = sphi 0, %s184
      %s201 = sphi 0, %s185
      %s207 = sphi 0, %s209
      %s210 = sphi 0, %s207
      %s211 = sphi 0, %s210
      %s227 = sphi 0, %s211
      %s233 = sphi 0, %s235
      %s236 = sphi 0, %s233
      %s237 = sphi 0, %s236
      %s253 = sphi 0, %s237
    $region4: #{dpcnn_forward.1} parent=1 // loop_header_branch
      %22 = sbr.rel (%p20) target = $region8
    $region5: #{dpcnn_forward.1} parent=1 // loop_body
      %s24 = ssub.s32 %s19, 1
      %s25 = ssub.s32 %s19, 2
      %s26 = sadd.s32 %s19, 1
      %s27 = ssub.s32 %s19, %s26
      %p28 = scmp.eq.s32.totalorder %s27, 0
      %s30 = sadd.s32 %s29, 1
      %s31 = scalar_select %p28, %s29, %s30
      %p34 = pneg %p28
      %p35 = scmp.eq.s32.totalorder %s19, 1
      %p36 = por %p34, %p35
      %p37 = scmp.ne.s32.totalorder %s29, %s32
      %p38 = scmp.eq.s32.totalorder %s19, 0
      %p39 = por %p37, %p38
      %p40 = scmp.ne.s32.totalorder %s29, %s32
      %p41 = scmp.eq.s32.totalorder %s24, 1
      %p42 = por %p40, %p41
      %p43 = scmp.ne.s32.totalorder %s32, %s33
      %p44 = scmp.eq.s32.totalorder %s24, 0
      %p45 = por %p43, %p44
      %p46 = scmp.ne.s32.totalorder %s32, %s33
      %p47 = scmp.eq.s32.totalorder %s25, 1
      %p48 = por %p46, %p47
      %p50 = scmp.ne.s32.totalorder %s33, %s49
      %p51 = scmp.eq.s32.totalorder %s25, 0
      %p52 = por %p50, %p51
      %s54 = sadd.s32 %s53, 1
      %p57 = scmp.eq.s32.totalorder %s19, 1
      %p58 = scmp.ne.s32.totalorder %s53, %s55
      %p59 = scmp.eq.s32.totalorder %s19, 0
      %p60 = por %p58, %p59
      %p61 = scmp.ne.s32.totalorder %s53, %s55
      %p62 = scmp.eq.s32.totalorder %s24, 1
      %p63 = por %p61, %p62
      %p64 = scmp.ne.s32.totalorder %s55, %s56
      %p65 = scmp.eq.s32.totalorder %s24, 0
      %p66 = por %p64, %p65
      %p67 = scmp.ne.s32.totalorder %s55, %s56
      %p68 = scmp.eq.s32.totalorder %s25, 1
      %p69 = por %p67, %p68
      %p71 = scmp.ne.s32.totalorder %s56, %s70
      %p72 = scmp.eq.s32.totalorder %s25, 0
      %p73 = por %p71, %p72
      %s75 = sadd.s32 %s74, 1
      %p78 = scmp.eq.s32.totalorder %s19, 1
      %p79 = scmp.ne.s32.totalorder %s74, %s76
      %p80 = scmp.eq.s32.totalorder %s19, 0
      %p81 = por %p79, %p80
      %p82 = scmp.ne.s32.totalorder %s74, %s76
      %p83 = scmp.eq.s32.totalorder %s24, 1
      %p84 = por %p82, %p83
      %p85 = scmp.ne.s32.totalorder %s76, %s77
      %p86 = scmp.eq.s32.totalorder %s24, 0
      %p87 = por %p85, %p86
      %p88 = scmp.ne.s32.totalorder %s76, %s77
      %p89 = scmp.eq.s32.totalorder %s25, 1
      %p90 = por %p88, %p89
      %p92 = scmp.ne.s32.totalorder %s77, %s91
      %p93 = scmp.eq.s32.totalorder %s25, 0
      %p94 = por %p92, %p93
      %s96 = sadd.s32 %s95, 1
      %p99 = scmp.eq.s32.totalorder %s19, 1
      %p100 = scmp.ne.s32.totalorder %s95, %s97
      %p101 = scmp.eq.s32.totalorder %s19, 0
      %p102 = por %p100, %p101
      %p103 = scmp.ne.s32.totalorder %s95, %s97
      %p104 = scmp.eq.s32.totalorder %s24, 1
      %p105 = por %p103, %p104
      %p106 = scmp.ne.s32.totalorder %s97, %s98
      %p107 = scmp.eq.s32.totalorder %s24, 0
      %p108 = por %p106, %p107
      %p109 = scmp.ne.s32.totalorder %s97, %s98
      %p110 = scmp.eq.s32.totalorder %s25, 1
      %p111 = por %p109, %p110
      %p113 = scmp.ne.s32.totalorder %s98, %s112
      %p114 = scmp.eq.s32.totalorder %s25, 0
      %p115 = por %p113, %p114
      %s117 = sadd.s32 %s116, 1
      %p120 = scmp.eq.s32.totalorder %s19, 1
      %p121 = scmp.ne.s32.totalorder %s116, %s118
      %p122 = scmp.eq.s32.totalorder %s19, 0
      %p123 = por %p121, %p122
      %p124 = scmp.ne.s32.totalorder %s116, %s118
      %p125 = scmp.eq.s32.totalorder %s24, 1
      %p126 = por %p124, %p125
      %p127 = scmp.ne.s32.totalorder %s118, %s119
      %p128 = scmp.eq.s32.totalorder %s24, 0
      %p129 = por %p127, %p128
      %p130 = scmp.ne.s32.totalorder %s118, %s119
      %p131 = scmp.eq.s32.totalorder %s25, 1
      %p132 = por %p130, %p131
      %p134 = scmp.ne.s32.totalorder %s119, %s133
      %p135 = scmp.eq.s32.totalorder %s25, 0
      %p136 = por %p134, %p135
      %s138 = sadd.s32 %s137, 1
      %p141 = scmp.eq.s32.totalorder %s19, 1
      %p142 = scmp.ne.s32.totalorder %s137, %s139
      %p143 = scmp.eq.s32.totalorder %s19, 0
      %p144 = por %p142, %p143
      %p145 = scmp.ne.s32.totalorder %s137, %s139
      %p146 = scmp.eq.s32.totalorder %s24, 1
      %p147 = por %p145, %p146
      %p148 = scmp.ne.s32.totalorder %s139, %s140
      %p149 = scmp.eq.s32.totalorder %s24, 0
      %p150 = por %p148, %p149
      %p151 = scmp.ne.s32.totalorder %s139, %s140
      %p152 = scmp.eq.s32.totalorder %s25, 1
      %p153 = por %p151, %p152
      %p155 = scmp.ne.s32.totalorder %s140, %s154
      %p156 = scmp.eq.s32.totalorder %s25, 0
      %p157 = por %p155, %p156
      %s159 = sadd.s32 %s158, 1
      %p162 = scmp.eq.s32.totalorder %s19, 1
      %p163 = scmp.ne.s32.totalorder %s158, %s160
      %p164 = scmp.eq.s32.totalorder %s19, 0
      %p165 = por %p163, %p164
      %p166 = scmp.ne.s32.totalorder %s158, %s160
      %p167 = scmp.eq.s32.totalorder %s24, 1
      %p168 = por %p166, %p167
      %p169 = scmp.ne.s32.totalorder %s160, %s161
      %p170 = scmp.eq.s32.totalorder %s24, 0
      %p171 = por %p169, %p170
      %p172 = scmp.ne.s32.totalorder %s160, %s161
      %p173 = scmp.eq.s32.totalorder %s25, 1
      %p174 = por %p172, %p173
      %p176 = scmp.ne.s32.totalorder %s161, %s175
      %p177 = scmp.eq.s32.totalorder %s25, 0
      %p178 = por %p176, %p177
      %s179 = ssub.s32 %s19, %s26
      %p180 = scmp.eq.s32.totalorder %s179, 0
      %s182 = sadd.s32 %s181, 1
      %s183 = scalar_select %p180, %s181, %s182
      %p186 = pneg %p180
      %p187 = scmp.eq.s32.totalorder %s19, 1
      %p188 = por %p186, %p187
      %p189 = scmp.ne.s32.totalorder %s181, %s184
      %p190 = scmp.eq.s32.totalorder %s19, 0
      %p191 = por %p189, %p190
      %p192 = scmp.ne.s32.totalorder %s181, %s184
      %p193 = scmp.eq.s32.totalorder %s24, 1
      %p194 = por %p192, %p193
      %p195 = scmp.ne.s32.totalorder %s184, %s185
      %p196 = scmp.eq.s32.totalorder %s24, 0
      %p197 = por %p195, %p196
      %p198 = scmp.ne.s32.totalorder %s184, %s185
      %p199 = scmp.eq.s32.totalorder %s25, 1
      %p200 = por %p198, %p199
      %p202 = scmp.ne.s32.totalorder %s185, %s201
      %p203 = scmp.eq.s32.totalorder %s25, 0
      %p204 = por %p202, %p203
      %s205 = ssub.s32 %s19, %s26
      %p206 = scmp.eq.s32.totalorder %s205, 0
      %s208 = sadd.s32 %s207, 1
      %s209 = scalar_select %p206, %s207, %s208
      %p212 = pneg %p206
      %p213 = scmp.eq.s32.totalorder %s19, 1
      %p214 = por %p212, %p213
      %p215 = scmp.ne.s32.totalorder %s207, %s210
      %p216 = scmp.eq.s32.totalorder %s19, 0
      %p217 = por %p215, %p216
      %p218 = scmp.ne.s32.totalorder %s207, %s210
      %p219 = scmp.eq.s32.totalorder %s24, 1
      %p220 = por %p218, %p219
      %p221 = scmp.ne.s32.totalorder %s210, %s211
      %p222 = scmp.eq.s32.totalorder %s24, 0
      %p223 = por %p221, %p222
      %p224 = scmp.ne.s32.totalorder %s210, %s211
      %p225 = scmp.eq.s32.totalorder %s25, 1
      %p226 = por %p224, %p225
      %p228 = scmp.ne.s32.totalorder %s211, %s227
      %p229 = scmp.eq.s32.totalorder %s25, 0
      %p230 = por %p228, %p229
      %s231 = ssub.s32 %s19, %s26
      %p232 = scmp.eq.s32.totalorder %s231, 0
      %s234 = sadd.s32 %s233, 1
      %s235 = scalar_select %p232, %s233, %s234
      %p238 = pneg %p232
      %p239 = scmp.eq.s32.totalorder %s19, 1
      %p240 = por %p238, %p239
      %p241 = scmp.ne.s32.totalorder %s233, %s236
      %p242 = scmp.eq.s32.totalorder %s19, 0
      %p243 = por %p241, %p242
      %p244 = scmp.ne.s32.totalorder %s233, %s236
      %p245 = scmp.eq.s32.totalorder %s24, 1
      %p246 = por %p244, %p245
      %p247 = scmp.ne.s32.totalorder %s236, %s237
      %p248 = scmp.eq.s32.totalorder %s24, 0
      %p249 = por %p247, %p248
      %p250 = scmp.ne.s32.totalorder %s236, %s237
      %p251 = scmp.eq.s32.totalorder %s25, 1
      %p252 = por %p250, %p251
      %p254 = scmp.ne.s32.totalorder %s237, %s253
      %p255 = scmp.eq.s32.totalorder %s25, 0
      %p256 = por %p254, %p255
      %p257 = scmp.le.s32.totalorder 1, %s19
      %p258 = scmp.lt.s32.totalorder %s19, 3
      %p259 = pnand %p257, %p258
      %p260 = pneg %p259
      // Predicated region
      $region9: #{dpcnn_forward.1} parent=5 // pred_check
        _
      $region10: #{dpcnn_forward.1} parent=5 // pred_check_branch
        %262 = sbr.rel (%p259) target = $region12
      $region11: #{dpcnn_forward.1} parent=5 // pred_region
        %s263 = ssub.s32 %s19, 1
        // Predicated region
        $region13: #{dpcnn_forward.1} parent=11 // pred_check
          %p264 = pneg %p66
        $region14: #{dpcnn_forward.1} parent=11 // pred_check_branch
          %266 = sbr.rel (%p264) target = $region16
        $region15: #{dpcnn_forward.1} parent=11 // pred_region
          _
        $region16: #{dpcnn_forward.1} parent=11 // pred_fallthru
          _
        // Predicated region
        $region17: #{dpcnn_forward.1} parent=11 // pred_check
          %p267 = pneg %p87
        $region18: #{dpcnn_forward.1} parent=11 // pred_check_branch
          %269 = sbr.rel (%p267) target = $region20
        $region19: #{dpcnn_forward.1} parent=11 // pred_region
          _
        $region20: #{dpcnn_forward.1} parent=11 // pred_fallthru
          _
        // Predicated region
        $region21: #{dpcnn_forward.1} parent=11 // pred_check
          %p270 = pneg %p108
        $region22: #{dpcnn_forward.1} parent=11 // pred_check_branch
          %272 = sbr.rel (%p270) target = $region24
        $region23: #{dpcnn_forward.1} parent=11 // pred_region
          _
        $region24: #{dpcnn_forward.1} parent=11 // pred_fallthru
          _
        // Predicated region
        $region25: #{dpcnn_forward.1} parent=11 // pred_check
          %p273 = pneg %p129
        $region26: #{dpcnn_forward.1} parent=11 // pred_check_branch
          %275 = sbr.rel (%p273) target = $region28
        $region27: #{dpcnn_forward.1} parent=11 // pred_region
          _
        $region28: #{dpcnn_forward.1} parent=11 // pred_fallthru
          _
        // Predicated region
        $region29: #{dpcnn_forward.1} parent=11 // pred_check
          %p276 = pneg %p150
        $region30: #{dpcnn_forward.1} parent=11 // pred_check_branch
          %278 = sbr.rel (%p276) target = $region32
        $region31: #{dpcnn_forward.1} parent=11 // pred_region
          _
        $region32: #{dpcnn_forward.1} parent=11 // pred_fallthru
          _
        // Predicated region
        $region33: #{dpcnn_forward.1} parent=11 // pred_check
          %p279 = pneg %p171
        $region34: #{dpcnn_forward.1} parent=11 // pred_check_branch
          %281 = sbr.rel (%p279) target = $region36
        $region35: #{dpcnn_forward.1} parent=11 // pred_region
          _
        $region36: #{dpcnn_forward.1} parent=11 // pred_fallthru
          _
      $region12: #{dpcnn_forward.1} parent=5 // pred_fallthru
        _
      %p282 = scmp.lt.s32.totalorder %s19, 2
      // Predicated region
      $region37: #{dpcnn_forward.1} parent=5 // pred_check
        %p283 = pneg %p282
      $region38: #{dpcnn_forward.1} parent=5 // pred_check_branch
        %285 = sbr.rel (%p283) target = $region40
      $region39: #{dpcnn_forward.1} parent=5 // pred_region
        // Predicated region
        $region41: #{dpcnn_forward.1} parent=39 // pred_check
          %p286 = pneg %p39
        $region42: #{dpcnn_forward.1} parent=39 // pred_check_branch
          %288 = sbr.rel (%p286) target = $region44
        $region43: #{dpcnn_forward.1} parent=39 // pred_region
          %p289 = scmp.lt.s32.totalorder %s19, 1
          %s290 = scalar_select %p289, %s19, 1
          %s291 = smul.addr %s290, 2
          %s292 = smul.addr %s291, 8
          %s293 = scalar_lea.vmem %s0, %s292
        $region44: #{dpcnn_forward.1} parent=39 // pred_fallthru
          _
        // Predicated region
        $region45: #{dpcnn_forward.1} parent=39 // pred_check
          %p294 = pneg %p191
        $region46: #{dpcnn_forward.1} parent=39 // pred_check_branch
          %296 = sbr.rel (%p294) target = $region48
        $region47: #{dpcnn_forward.1} parent=39 // pred_region
          %p297 = scmp.lt.s32.totalorder %s19, 1
          %s298 = scalar_select %p297, %s19, 1
          %s299 = scalar_lea.vmem %s7, %s298
        $region48: #{dpcnn_forward.1} parent=39 // pred_fallthru
          _
      $region40: #{dpcnn_forward.1} parent=5 // pred_fallthru
        _
      %p300 = scmp.le.s32.totalorder 1, %s19
      %p301 = scmp.lt.s32.totalorder %s19, 3
      %p302 = pnand %p300, %p301
      %p303 = pneg %p302
      // Predicated region
      $region49: #{dpcnn_forward.1} parent=5 // pred_check
        _
      $region50: #{dpcnn_forward.1} parent=5 // pred_check_branch
        %305 = sbr.rel (%p302) target = $region52
      $region51: #{dpcnn_forward.1} parent=5 // pred_region
        %s306 = ssub.s32 %s19, 1
        %p307 = scmp.lt.s32.totalorder %s24, 1
        %s308 = scalar_select %p307, %s24, 1
        %s309 = smul.addr %s308, 2
        %s310 = smul.addr %s309, 8
        %s311 = scalar_lea.vmem %s0, %s310
        %p312 = pneg %p45
        %p313 = pneg %p42
        %p314 = pneg %p66
        %p315 = pneg %p63
        %p316 = pneg %p87
        %p317 = pneg %p84
        %p318 = pneg %p108
        %p319 = pneg %p105
        %p320 = pneg %p129
        %p321 = pneg %p126
        %p322 = pneg %p150
        %p323 = pneg %p147
        %p324 = pneg %p171
        %p325 = pneg %p168
        %p326 = scmp.lt.s32.totalorder %s24, 1
        %s327 = scalar_select %p326, %s24, 1
        %s328 = scalar_lea.vmem %s7, %s327
        %p329 = pneg %p197
        %p330 = pneg %p194
        %p331 = pneg %p223
        %p332 = pneg %p220
        %p333 = scmp.lt.s32.totalorder %s24, 1
        %s334 = scalar_select %p333, %s24, 1
        %s335 = scalar_lea.vmem %s8, %s334
        %p336 = pneg %p249
        %p337 = pneg %p246
        %s338 = sand.u32 %s236, 1
        %s339 = scalar_lea.sflag [#allocation4], %s338
        %s340 = sand.u32 %s236, 1
        %s341 = scalar_lea.vmem [#allocation3], %s340
        %p342 = scmp.lt.s32.totalorder %s24, 1
        %s343 = scalar_select %p342, %s24, 1
        %s344 = smul.addr %s343, 2
        %s345 = smul.addr %s344, 8
        %s346 = scalar_lea.vmem %s0, %s345
        %p347 = scmp.lt.s32.totalorder %s24, 1
        %s348 = scalar_select %p347, %s24, 1
        %s349 = scalar_lea.vmem %s7, %s348
        %p350 = scmp.lt.s32.totalorder %s24, 1
        %s351 = scalar_select %p350, %s24, 1
        %s352 = scalar_lea.vmem %s8, %s351
        %v353 = vld [vmem:[%s346] sm:$0xff]
        %v354 = vld [vmem:[%s346 + $0x8] sm:$0xff]
        %355 = vst [vmem:[#allocation2 + $0x8] sm:$0xff] %v353
        %356 = vst [vmem:[#allocation2 + $0x10] sm:$0xff] %v354
        %v357 = vld [vmem:[#allocation2 + $0x8] sm:$0xff]
        %v358 = vld [vmem:[#allocation2 + $0x10] sm:$0x3f]
        %v359 = vld [vmem:[#allocation2 + $0x9] sm:$0xff]
        %v360 = vld [vmem:[#allocation2 + $0x11] sm:$0x3f]
        %v361 = vld [vmem:[#allocation2 + $0xa] sm:$0xff]
        %v362 = vld [vmem:[#allocation2 + $0x12] sm:$0x3f]
        %v363 = vld [vmem:[%s1] sm:$0xff]
        %v364 = vld [vmem:[%s1 + $0x8] sm:$0xff]
        %v365 = vld [vmem:[%s1 + $0x10] sm:$0xff]
        %v366 = vld [vmem:[%s1 + $0x18] sm:$0xff]
        %v367 = vld [vmem:[%s1 + $0x20] sm:$0xff]
        %v368 = vld [vmem:[%s1 + $0x28] sm:$0xff]
        %v369 = vld [vmem:[%s1 + $0x30] sm:$0xff]
        %v370 = vld [vmem:[%s1 + $0x38] sm:$0xff]
        %v371 = vld [vmem:[%s1 + $0x40] sm:$0xff]
        %v372 = vld [vmem:[%s1 + $0x48] sm:$0xff]
        %v373 = vld [vmem:[%s1 + $0x50] sm:$0xff]
        %v374 = vld [vmem:[%s1 + $0x58] sm:$0xff]
        %v375 = vld [vmem:[%s1 + $0x60] sm:$0xff]
        %v376 = vld [vmem:[%s1 + $0x68] sm:$0xff]
        %v377 = vld [vmem:[%s1 + $0x70] sm:$0xff]
        %v378 = vld [vmem:[%s1 + $0x78] sm:$0xff]
        %v379 = vld [vmem:[%s1 + $0x80] sm:$0xff]
        %v380 = vld [vmem:[%s1 + $0x88] sm:$0xff]
        %v381 = vld [vmem:[%s1 + $0x90] sm:$0xff]
        %v382 = vld [vmem:[%s1 + $0x98] sm:$0xff]
        %v383 = vld [vmem:[%s1 + $0xa0] sm:$0xff]
        %v384 = vld [vmem:[%s1 + $0xa8] sm:$0xff]
        %v385 = vld [vmem:[%s1 + $0xb0] sm:$0xff]
        %v386 = vld [vmem:[%s1 + $0xb8] sm:$0xff]
        %v387 = vld [vmem:[%s1 + $0xc0] sm:$0xff]
        %v388 = vld [vmem:[%s1 + $0xc8] sm:$0xff]
        %v389 = vld [vmem:[%s1 + $0xd0] sm:$0xff]
        %v390 = vld [vmem:[%s1 + $0xd8] sm:$0xff]
        %v391 = vld [vmem:[%s1 + $0xe0] sm:$0xff]
        %v392 = vld [vmem:[%s1 + $0xe8] sm:$0xff]
        %v393 = vld [vmem:[%s1 + $0xf0] sm:$0xff]
        %v394 = vld [vmem:[%s1 + $0xf8] sm:$0xff]
        %v395 = vld [vmem:[%s1 + $0x100] sm:$0xff]
        %v396 = vld [vmem:[%s1 + $0x108] sm:$0xff]
        %v397 = vld [vmem:[%s1 + $0x110] sm:$0xff]
        %v398 = vld [vmem:[%s1 + $0x118] sm:$0xff]
        %v399 = vld [vmem:[%s1 + $0x120] sm:$0xff]
        %v400 = vld [vmem:[%s1 + $0x128] sm:$0xff]
        %v401 = vld [vmem:[%s1 + $0x130] sm:$0xff]
        %v402 = vld [vmem:[%s1 + $0x138] sm:$0xff]
        %v403 = vld [vmem:[%s1 + $0x140] sm:$0xff]
        %v404 = vld [vmem:[%s1 + $0x148] sm:$0xff]
        %v405 = vld [vmem:[%s1 + $0x150] sm:$0xff]
        %v406 = vld [vmem:[%s1 + $0x158] sm:$0xff]
        %v407 = vld [vmem:[%s1 + $0x160] sm:$0xff]
        %v408 = vld [vmem:[%s1 + $0x168] sm:$0xff]
        %v409 = vld [vmem:[%s1 + $0x170] sm:$0xff]
        %v410 = vld [vmem:[%s1 + $0x178] sm:$0xff]
        %v411 = vld [vmem:[%s2] sm:$0x1]
        %v413 = vperm.slane %v411, 0
        %415 = vmatpush.msra.mxu0 %v378
        %416 = vmatpush.msra.mxu0 %v377
        %417 = vmatpush.msra.mxu0 %v376
        %418 = vmatpush.msra.mxu0 %v375
        %419 = vmatpush.msra.mxu0 %v374
        %420 = vmatpush.msra.mxu0 %v373
        %421 = vmatpush.msra.mxu0 %v372
        %422 = vmatpush.msra.mxu0 %v371
        %423 = vmatpush.msra.mxu0 %v370
        %424 = vmatpush.msra.mxu0 %v369
        %425 = vmatpush.msra.mxu0 %v368
        %426 = vmatpush.msra.mxu0 %v367
        %427 = vmatpush.msra.mxu0 %v366
        %428 = vmatpush.msra.mxu0 %v365
        %429 = vmatpush.msra.mxu0 %v364
        %430 = vmatpush.msra.mxu0 %v363
        %431 = vmatmul.f32.gmra.mxu0 %v357
        %v432 = vpop.f32.mrf.mxu0
        %v433 = vadd.f32 %v413, %v432
        %434 = vmatmul.f32.gmra.mxu0 %v358
        %v435 = vpop.f32.mrf.mxu0
        %v436 = vadd.f32 %v413, %v435
        %437 = vdwg.mxu0
        %438 = vmatpush.msra.mxu0 %v394
        %439 = vmatpush.msra.mxu0 %v393
        %440 = vmatpush.msra.mxu0 %v392
        %441 = vmatpush.msra.mxu0 %v391
        %442 = vmatpush.msra.mxu0 %v390
        %443 = vmatpush.msra.mxu0 %v389
        %444 = vmatpush.msra.mxu0 %v388
        %445 = vmatpush.msra.mxu0 %v387
        %446 = vmatpush.msra.mxu0 %v386
        %447 = vmatpush.msra.mxu0 %v385
        %448 = vmatpush.msra.mxu0 %v384
        %449 = vmatpush.msra.mxu0 %v383
        %450 = vmatpush.msra.mxu0 %v382
        %451 = vmatpush.msra.mxu0 %v381
        %452 = vmatpush.msra.mxu0 %v380
        %453 = vmatpush.msra.mxu0 %v379
        %454 = vmatmul.f32.gmra.mxu0 %v359
        %v455 = vpop.f32.mrf.mxu0
        %v456 = vadd.f32 %v433, %v455
        %457 = vmatmul.f32.gmra.mxu0 %v360
        %v458 = vpop.f32.mrf.mxu0
        %v459 = vadd.f32 %v436, %v458
        %460 = vdwg.mxu0
        %461 = vmatpush.msra.mxu0 %v410
        %462 = vmatpush.msra.mxu0 %v409
        %463 = vmatpush.msra.mxu0 %v408
        %464 = vmatpush.msra.mxu0 %v407
        %465 = vmatpush.msra.mxu0 %v406
        %466 = vmatpush.msra.mxu0 %v405
        %467 = vmatpush.msra.mxu0 %v404
        %468 = vmatpush.msra.mxu0 %v403
        %469 = vmatpush.msra.mxu0 %v402
        %470 = vmatpush.msra.mxu0 %v401
        %471 = vmatpush.msra.mxu0 %v400
        %472 = vmatpush.msra.mxu0 %v399
        %473 = vmatpush.msra.mxu0 %v398
        %474 = vmatpush.msra.mxu0 %v397
        %475 = vmatpush.msra.mxu0 %v396
        %476 = vmatpush.msra.mxu0 %v395
        %477 = vmatmul.f32.gmra.mxu0 %v361
        %v478 = vpop.f32.mrf.mxu0
        %v479 = vadd.f32 %v456, %v478
        %480 = vmatmul.f32.gmra.mxu0 %v362
        %v481 = vpop.f32.mrf.mxu0
        %v482 = vadd.f32 %v459, %v481
        %483 = vdwg.mxu0
        %v484 = vmax.f32 %v479, 0.0
        %v485 = vmax.f32 %v482, 0.0
        %486 = vst [vmem:[#allocation2 + $0x7] sm:$0x1] 0.0
        %487 = vst [vmem:[#allocation2 + $0x16] sm:$0x1] 0.0
        %488 = vst [vmem:[#allocation2 + $0x8] sm:$0xff] %v484
        %489 = vst [vmem:[#allocation2 + $0x10] sm:$0x3f] %v485
        %v490 = vld [vmem:[#allocation2 + $0x7] sm:$0xff]
        %v491 = vld [vmem:[#allocation2 + $0xf] sm:$0x3f]
        %v492 = vld [vmem:[#allocation2 + $0x8] sm:$0xff]
        %v493 = vld [vmem:[#allocation2 + $0x10] sm:$0x3f]
        %v494 = vld [vmem:[#allocation2 + $0x9] sm:$0xff]
        %v495 = vld [vmem:[#allocation2 + $0x11] sm:$0x3f]
        %v496 = vld [vmem:[%s3] sm:$0xff]
        %v497 = vld [vmem:[%s3 + $0x8] sm:$0xff]
        %v498 = vld [vmem:[%s3 + $0x10] sm:$0xff]
        %v499 = vld [vmem:[%s3 + $0x18] sm:$0xff]
        %v500 = vld [vmem:[%s3 + $0x20] sm:$0xff]
        %v501 = vld [vmem:[%s3 + $0x28] sm:$0xff]
        %v502 = vld [vmem:[%s3 + $0x30] sm:$0xff]
        %v503 = vld [vmem:[%s3 + $0x38] sm:$0xff]
        %v504 = vld [vmem:[%s3 + $0x40] sm:$0xff]
        %v505 = vld [vmem:[%s3 + $0x48] sm:$0xff]
        %v506 = vld [vmem:[%s3 + $0x50] sm:$0xff]
        %v507 = vld [vmem:[%s3 + $0x58] sm:$0xff]
        %v508 = vld [vmem:[%s3 + $0x60] sm:$0xff]
        %v509 = vld [vmem:[%s3 + $0x68] sm:$0xff]
        %v510 = vld [vmem:[%s3 + $0x70] sm:$0xff]
        %v511 = vld [vmem:[%s3 + $0x78] sm:$0xff]
        %v512 = vld [vmem:[%s3 + $0x80] sm:$0xff]
        %v513 = vld [vmem:[%s3 + $0x88] sm:$0xff]
        %v514 = vld [vmem:[%s3 + $0x90] sm:$0xff]
        %v515 = vld [vmem:[%s3 + $0x98] sm:$0xff]
        %v516 = vld [vmem:[%s3 + $0xa0] sm:$0xff]
        %v517 = vld [vmem:[%s3 + $0xa8] sm:$0xff]
        %v518 = vld [vmem:[%s3 + $0xb0] sm:$0xff]
        %v519 = vld [vmem:[%s3 + $0xb8] sm:$0xff]
        %v520 = vld [vmem:[%s3 + $0xc0] sm:$0xff]
        %v521 = vld [vmem:[%s3 + $0xc8] sm:$0xff]
        %v522 = vld [vmem:[%s3 + $0xd0] sm:$0xff]
        %v523 = vld [vmem:[%s3 + $0xd8] sm:$0xff]
        %v524 = vld [vmem:[%s3 + $0xe0] sm:$0xff]
        %v525 = vld [vmem:[%s3 + $0xe8] sm:$0xff]
        %v526 = vld [vmem:[%s3 + $0xf0] sm:$0xff]
        %v527 = vld [vmem:[%s3 + $0xf8] sm:$0xff]
        %v528 = vld [vmem:[%s3 + $0x100] sm:$0xff]
        %v529 = vld [vmem:[%s3 + $0x108] sm:$0xff]
        %v530 = vld [vmem:[%s3 + $0x110] sm:$0xff]
        %v531 = vld [vmem:[%s3 + $0x118] sm:$0xff]
        %v532 = vld [vmem:[%s3 + $0x120] sm:$0xff]
        %v533 = vld [vmem:[%s3 + $0x128] sm:$0xff]
        %v534 = vld [vmem:[%s3 + $0x130] sm:$0xff]
        %v535 = vld [vmem:[%s3 + $0x138] sm:$0xff]
        %v536 = vld [vmem:[%s3 + $0x140] sm:$0xff]
        %v537 = vld [vmem:[%s3 + $0x148] sm:$0xff]
        %v538 = vld [vmem:[%s3 + $0x150] sm:$0xff]
        %v539 = vld [vmem:[%s3 + $0x158] sm:$0xff]
        %v540 = vld [vmem:[%s3 + $0x160] sm:$0xff]
        %v541 = vld [vmem:[%s3 + $0x168] sm:$0xff]
        %v542 = vld [vmem:[%s3 + $0x170] sm:$0xff]
        %v543 = vld [vmem:[%s3 + $0x178] sm:$0xff]
        %v544 = vld [vmem:[%s4] sm:$0x1]
        %v546 = vperm.slane %v544, 0
        %548 = vmatpush.msra.mxu0 %v511
        %549 = vmatpush.msra.mxu0 %v510
        %550 = vmatpush.msra.mxu0 %v509
        %551 = vmatpush.msra.mxu0 %v508
        %552 = vmatpush.msra.mxu0 %v507
        %553 = vmatpush.msra.mxu0 %v506
        %554 = vmatpush.msra.mxu0 %v505
        %555 = vmatpush.msra.mxu0 %v504
        %556 = vmatpush.msra.mxu0 %v503
        %557 = vmatpush.msra.mxu0 %v502
        %558 = vmatpush.msra.mxu0 %v501
        %559 = vmatpush.msra.mxu0 %v500
        %560 = vmatpush.msra.mxu0 %v499
        %561 = vmatpush.msra.mxu0 %v498
        %562 = vmatpush.msra.mxu0 %v497
        %563 = vmatpush.msra.mxu0 %v496
        %564 = vmatmul.f32.gmra.mxu0 %v490
        %v565 = vpop.f32.mrf.mxu0
        %v566 = vadd.f32 %v546, %v565
        %567 = vmatmul.f32.gmra.mxu0 %v491
        %v568 = vpop.f32.mrf.mxu0
        %v569 = vadd.f32 %v546, %v568
        %570 = vdwg.mxu0
        %571 = vmatpush.msra.mxu0 %v527
        %572 = vmatpush.msra.mxu0 %v526
        %573 = vmatpush.msra.mxu0 %v525
        %574 = vmatpush.msra.mxu0 %v524
        %575 = vmatpush.msra.mxu0 %v523
        %576 = vmatpush.msra.mxu0 %v522
        %577 = vmatpush.msra.mxu0 %v521
        %578 = vmatpush.msra.mxu0 %v520
        %579 = vmatpush.msra.mxu0 %v519
        %580 = vmatpush.msra.mxu0 %v518
        %581 = vmatpush.msra.mxu0 %v517
        %582 = vmatpush.msra.mxu0 %v516
        %583 = vmatpush.msra.mxu0 %v515
        %584 = vmatpush.msra.mxu0 %v514
        %585 = vmatpush.msra.mxu0 %v513
        %586 = vmatpush.msra.mxu0 %v512
        %587 = vmatmul.f32.gmra.mxu0 %v492
        %v588 = vpop.f32.mrf.mxu0
        %v589 = vadd.f32 %v566, %v588
        %590 = vmatmul.f32.gmra.mxu0 %v493
        %v591 = vpop.f32.mrf.mxu0
        %v592 = vadd.f32 %v569, %v591
        %593 = vdwg.mxu0
        %594 = vmatpush.msra.mxu0 %v543
        %595 = vmatpush.msra.mxu0 %v542
        %596 = vmatpush.msra.mxu0 %v541
        %597 = vmatpush.msra.mxu0 %v540
        %598 = vmatpush.msra.mxu0 %v539
        %599 = vmatpush.msra.mxu0 %v538
        %600 = vmatpush.msra.mxu0 %v537
        %601 = vmatpush.msra.mxu0 %v536
        %602 = vmatpush.msra.mxu0 %v535
        %603 = vmatpush.msra.mxu0 %v534
        %604 = vmatpush.msra.mxu0 %v533
        %605 = vmatpush.msra.mxu0 %v532
        %606 = vmatpush.msra.mxu0 %v531
        %607 = vmatpush.msra.mxu0 %v530
        %608 = vmatpush.msra.mxu0 %v529
        %609 = vmatpush.msra.mxu0 %v528
        %610 = vmatmul.f32.gmra.mxu0 %v494
        %v611 = vpop.f32.mrf.mxu0
        %v612 = vadd.f32 %v589, %v611
        %613 = vmatmul.f32.gmra.mxu0 %v495
        %v614 = vpop.f32.mrf.mxu0
        %v615 = vadd.f32 %v592, %v614
        %616 = vdwg.mxu0
        %v617 = vmax.f32 %v612, 0.0
        %v618 = vmax.f32 %v615, 0.0
        %619 = vst [vmem:[#allocation2 + $0x16] sm:$0x1] 0.0
        %620 = vst [vmem:[#allocation2 + $0x8] sm:$0xff] %v617
        %621 = vst [vmem:[#allocation2 + $0x10] sm:$0x3f] %v618
        %v622 = vld [vmem:[#allocation2 + $0x8] sm:$0xff]
        %v623 = vld [vmem:[#allocation2 + $0x10] sm:$0x1f]
        %v624 = vld [vmem:[#allocation2 + $0x9] sm:$0xff]
        %v625 = vld [vmem:[#allocation2 + $0x11] sm:$0x1f]
        %v626 = vld [vmem:[#allocation2 + $0xa] sm:$0xff]
        %v627 = vld [vmem:[#allocation2 + $0x12] sm:$0x1f]
        %v628 = vld [vmem:[%s3] sm:$0xff]
        %v629 = vld [vmem:[%s3 + $0x8] sm:$0xff]
        %v630 = vld [vmem:[%s3 + $0x10] sm:$0xff]
        %v631 = vld [vmem:[%s3 + $0x18] sm:$0xff]
        %v632 = vld [vmem:[%s3 + $0x20] sm:$0xff]
        %v633 = vld [vmem:[%s3 + $0x28] sm:$0xff]
        %v634 = vld [vmem:[%s3 + $0x30] sm:$0xff]
        %v635 = vld [vmem:[%s3 + $0x38] sm:$0xff]
        %v636 = vld [vmem:[%s3 + $0x40] sm:$0xff]
        %v637 = vld [vmem:[%s3 + $0x48] sm:$0xff]
        %v638 = vld [vmem:[%s3 + $0x50] sm:$0xff]
        %v639 = vld [vmem:[%s3 + $0x58] sm:$0xff]
        %v640 = vld [vmem:[%s3 + $0x60] sm:$0xff]
        %v641 = vld [vmem:[%s3 + $0x68] sm:$0xff]
        %v642 = vld [vmem:[%s3 + $0x70] sm:$0xff]
        %v643 = vld [vmem:[%s3 + $0x78] sm:$0xff]
        %v644 = vld [vmem:[%s3 + $0x80] sm:$0xff]
        %v645 = vld [vmem:[%s3 + $0x88] sm:$0xff]
        %v646 = vld [vmem:[%s3 + $0x90] sm:$0xff]
        %v647 = vld [vmem:[%s3 + $0x98] sm:$0xff]
        %v648 = vld [vmem:[%s3 + $0xa0] sm:$0xff]
        %v649 = vld [vmem:[%s3 + $0xa8] sm:$0xff]
        %v650 = vld [vmem:[%s3 + $0xb0] sm:$0xff]
        %v651 = vld [vmem:[%s3 + $0xb8] sm:$0xff]
        %v652 = vld [vmem:[%s3 + $0xc0] sm:$0xff]
        %v653 = vld [vmem:[%s3 + $0xc8] sm:$0xff]
        %v654 = vld [vmem:[%s3 + $0xd0] sm:$0xff]
        %v655 = vld [vmem:[%s3 + $0xd8] sm:$0xff]
        %v656 = vld [vmem:[%s3 + $0xe0] sm:$0xff]
        %v657 = vld [vmem:[%s3 + $0xe8] sm:$0xff]
        %v658 = vld [vmem:[%s3 + $0xf0] sm:$0xff]
        %v659 = vld [vmem:[%s3 + $0xf8] sm:$0xff]
        %v660 = vld [vmem:[%s3 + $0x100] sm:$0xff]
        %v661 = vld [vmem:[%s3 + $0x108] sm:$0xff]
        %v662 = vld [vmem:[%s3 + $0x110] sm:$0xff]
        %v663 = vld [vmem:[%s3 + $0x118] sm:$0xff]
        %v664 = vld [vmem:[%s3 + $0x120] sm:$0xff]
        %v665 = vld [vmem:[%s3 + $0x128] sm:$0xff]
        %v666 = vld [vmem:[%s3 + $0x130] sm:$0xff]
        %v667 = vld [vmem:[%s3 + $0x138] sm:$0xff]
        %v668 = vld [vmem:[%s3 + $0x140] sm:$0xff]
        %v669 = vld [vmem:[%s3 + $0x148] sm:$0xff]
        %v670 = vld [vmem:[%s3 + $0x150] sm:$0xff]
        %v671 = vld [vmem:[%s3 + $0x158] sm:$0xff]
        %v672 = vld [vmem:[%s3 + $0x160] sm:$0xff]
        %v673 = vld [vmem:[%s3 + $0x168] sm:$0xff]
        %v674 = vld [vmem:[%s3 + $0x170] sm:$0xff]
        %v675 = vld [vmem:[%s3 + $0x178] sm:$0xff]
        %v676 = vld [vmem:[%s4] sm:$0x1]
        %v678 = vperm.slane %v676, 0
        %680 = vmatpush.msra.mxu0 %v643
        %681 = vmatpush.msra.mxu0 %v642
        %682 = vmatpush.msra.mxu0 %v641
        %683 = vmatpush.msra.mxu0 %v640
        %684 = vmatpush.msra.mxu0 %v639
        %685 = vmatpush.msra.mxu0 %v638
        %686 = vmatpush.msra.mxu0 %v637
        %687 = vmatpush.msra.mxu0 %v636
        %688 = vmatpush.msra.mxu0 %v635
        %689 = vmatpush.msra.mxu0 %v634
        %690 = vmatpush.msra.mxu0 %v633
        %691 = vmatpush.msra.mxu0 %v632
        %692 = vmatpush.msra.mxu0 %v631
        %693 = vmatpush.msra.mxu0 %v630
        %694 = vmatpush.msra.mxu0 %v629
        %695 = vmatpush.msra.mxu0 %v628
        %696 = vmatmul.f32.gmra.mxu0 %v622
        %v697 = vpop.f32.mrf.mxu0
        %v698 = vadd.f32 %v678, %v697
        %699 = vmatmul.f32.gmra.mxu0 %v623
        %v700 = vpop.f32.mrf.mxu0
        %v701 = vadd.f32 %v678, %v700
        %702 = vdwg.mxu0
        %703 = vmatpush.msra.mxu0 %v659
        %704 = vmatpush.msra.mxu0 %v658
        %705 = vmatpush.msra.mxu0 %v657
        %706 = vmatpush.msra.mxu0 %v656
        %707 = vmatpush.msra.mxu0 %v655
        %708 = vmatpush.msra.mxu0 %v654
        %709 = vmatpush.msra.mxu0 %v653
        %710 = vmatpush.msra.mxu0 %v652
        %711 = vmatpush.msra.mxu0 %v651
        %712 = vmatpush.msra.mxu0 %v650
        %713 = vmatpush.msra.mxu0 %v649
        %714 = vmatpush.msra.mxu0 %v648
        %715 = vmatpush.msra.mxu0 %v647
        %716 = vmatpush.msra.mxu0 %v646
        %717 = vmatpush.msra.mxu0 %v645
        %718 = vmatpush.msra.mxu0 %v644
        %719 = vmatmul.f32.gmra.mxu0 %v624
        %v720 = vpop.f32.mrf.mxu0
        %v721 = vadd.f32 %v698, %v720
        %722 = vmatmul.f32.gmra.mxu0 %v625
        %v723 = vpop.f32.mrf.mxu0
        %v724 = vadd.f32 %v701, %v723
        %725 = vdwg.mxu0
        %726 = vmatpush.msra.mxu0 %v675
        %727 = vmatpush.msra.mxu0 %v674
        %728 = vmatpush.msra.mxu0 %v673
        %729 = vmatpush.msra.mxu0 %v672
        %730 = vmatpush.msra.mxu0 %v671
        %731 = vmatpush.msra.mxu0 %v670
        %732 = vmatpush.msra.mxu0 %v669
        %733 = vmatpush.msra.mxu0 %v668
        %734 = vmatpush.msra.mxu0 %v667
        %735 = vmatpush.msra.mxu0 %v666
        %736 = vmatpush.msra.mxu0 %v665
        %737 = vmatpush.msra.mxu0 %v664
        %738 = vmatpush.msra.mxu0 %v663
        %739 = vmatpush.msra.mxu0 %v662
        %740 = vmatpush.msra.mxu0 %v661
        %741 = vmatpush.msra.mxu0 %v660
        %742 = vmatmul.f32.gmra.mxu0 %v626
        %v743 = vpop.f32.mrf.mxu0
        %v744 = vadd.f32 %v721, %v743
        %745 = vmatmul.f32.gmra.mxu0 %v627
        %v746 = vpop.f32.mrf.mxu0
        %v747 = vadd.f32 %v724, %v746
        %748 = vdwg.mxu0
        %749 = vst [vmem:[#allocation2 + $0x15] sm:$0x1] 0.0
        %750 = vst [vmem:[#allocation2 + $0x8] sm:$0xff] %v744
        %751 = vst [vmem:[#allocation2 + $0x10] sm:$0x1f] %v747
        %v752 = vld [vmem:[#allocation2 + $0x8] sm:$0xff]
        %v753 = vld [vmem:[#allocation2 + $0x10] sm:$0xf]
        %v754 = vld [vmem:[#allocation2 + $0x9] sm:$0xff]
        %v755 = vld [vmem:[#allocation2 + $0x11] sm:$0xf]
        %v756 = vmax.f32 %v752, %v754
        %v757 = vmax.f32 %v753, %v755
        %v758 = vld [vmem:[#allocation2 + $0xa] sm:$0xff]
        %v759 = vld [vmem:[#allocation2 + $0x12] sm:$0xf]
        %v760 = vmax.f32 %v756, %v758
        %v761 = vmax.f32 %v757, %v759
        %v762 = vlaneseq
        %v763 = vshrl.u32 %v762, 7
        %v764 = vlaneseq
        %v765 = vand.u32 %v764, 127
        %v766 = vmul.u32 %v763, 2
        %vm767 = vcmp.eq.s32.totalorder %v765, %v766
        %v768 = vsel %vm767, 1, 0
        %v769 = vcvt.s32.f32 %v768
        %vm770 = vcmask 97280
        %v772 = vsel %vm770, %v769, 0
        %vm774 = vcmask 1043456
        %v776 = vsel %vm774, %v761, 0
        %778 = vmatpush.msra.mxu0 0.0
        %779 = vmatpush.msra.mxu0 0.0
        %780 = vmatpush.msra.mxu0 0.0
        %781 = vmatpush.msra.mxu0 0.0
        %782 = vmatpush.msra.mxu0 0.0
        %783 = vmatpush.msra.mxu0 0.0
        %784 = vmatpush.msra.mxu0 0.0
        %785 = vmatpush.msra.mxu0 0.0
        %786 = vmatpush.msra.mxu0 0.0
        %787 = vmatpush.msra.mxu0 0.0
        %788 = vmatpush.msra.mxu0 0.0
        %789 = vmatpush.msra.mxu0 0.0
        %790 = vmatpush.msra.mxu0 0.0
        %791 = vmatpush.msra.mxu0 0.0
        %792 = vmatpush.msra.mxu0 %v776
        %793 = vmatpush.msra.mxu0 %v760
        %794 = vmatmul.f32.gmra.mxu0 %v772
        %v795 = vpop.f32.mrf.mxu0
        %v796 = vadd.f32 0.0, %v795
        %797 = vdwg.mxu0
        %v798 = vmax.f32 %v796, 0.0
        %799 = vst [vmem:[#allocation2 + $0x7] sm:$0x1] 0.0
        %800 = vst [vmem:[#allocation2 + $0xe] sm:$0x1] 0.0
        %801 = vst [vmem:[#allocation2 + $0x8] sm:$0x3f] %v798
        %v802 = vld [vmem:[#allocation2 + $0x7] sm:$0x3f]
        %v803 = vld [vmem:[#allocation2 + $0x8] sm:$0x3f]
        %v804 = vld [vmem:[#allocation2 + $0x9] sm:$0x3f]
        %v805 = vld [vmem:[%s3] sm:$0xff]
        %v806 = vld [vmem:[%s3 + $0x8] sm:$0xff]
        %v807 = vld [vmem:[%s3 + $0x10] sm:$0xff]
        %v808 = vld [vmem:[%s3 + $0x18] sm:$0xff]
        %v809 = vld [vmem:[%s3 + $0x20] sm:$0xff]
        %v810 = vld [vmem:[%s3 + $0x28] sm:$0xff]
        %v811 = vld [vmem:[%s3 + $0x30] sm:$0xff]
        %v812 = vld [vmem:[%s3 + $0x38] sm:$0xff]
        %v813 = vld [vmem:[%s3 + $0x40] sm:$0xff]
        %v814 = vld [vmem:[%s3 + $0x48] sm:$0xff]
        %v815 = vld [vmem:[%s3 + $0x50] sm:$0xff]
        %v816 = vld [vmem:[%s3 + $0x58] sm:$0xff]
        %v817 = vld [vmem:[%s3 + $0x60] sm:$0xff]
        %v818 = vld [vmem:[%s3 + $0x68] sm:$0xff]
        %v819 = vld [vmem:[%s3 + $0x70] sm:$0xff]
        %v820 = vld [vmem:[%s3 + $0x78] sm:$0xff]
        %v821 = vld [vmem:[%s3 + $0x80] sm:$0xff]
        %v822 = vld [vmem:[%s3 + $0x88] sm:$0xff]
        %v823 = vld [vmem:[%s3 + $0x90] sm:$0xff]
        %v824 = vld [vmem:[%s3 + $0x98] sm:$0xff]
        %v825 = vld [vmem:[%s3 + $0xa0] sm:$0xff]
        %v826 = vld [vmem:[%s3 + $0xa8] sm:$0xff]
        %v827 = vld [vmem:[%s3 + $0xb0] sm:$0xff]
        %v828 = vld [vmem:[%s3 + $0xb8] sm:$0xff]
        %v829 = vld [vmem:[%s3 + $0xc0] sm:$0xff]
        %v830 = vld [vmem:[%s3 + $0xc8] sm:$0xff]
        %v831 = vld [vmem:[%s3 + $0xd0] sm:$0xff]
        %v832 = vld [vmem:[%s3 + $0xd8] sm:$0xff]
        %v833 = vld [vmem:[%s3 + $0xe0] sm:$0xff]
        %v834 = vld [vmem:[%s3 + $0xe8] sm:$0xff]
        %v835 = vld [vmem:[%s3 + $0xf0] sm:$0xff]
        %v836 = vld [vmem:[%s3 + $0xf8] sm:$0xff]
        %v837 = vld [vmem:[%s3 + $0x100] sm:$0xff]
        %v838 = vld [vmem:[%s3 + $0x108] sm:$0xff]
        %v839 = vld [vmem:[%s3 + $0x110] sm:$0xff]
        %v840 = vld [vmem:[%s3 + $0x118] sm:$0xff]
        %v841 = vld [vmem:[%s3 + $0x120] sm:$0xff]
        %v842 = vld [vmem:[%s3 + $0x128] sm:$0xff]
        %v843 = vld [vmem:[%s3 + $0x130] sm:$0xff]
        %v844 = vld [vmem:[%s3 + $0x138] sm:$0xff]
        %v845 = vld [vmem:[%s3 + $0x140] sm:$0xff]
        %v846 = vld [vmem:[%s3 + $0x148] sm:$0xff]
        %v847 = vld [vmem:[%s3 + $0x150] sm:$0xff]
        %v848 = vld [vmem:[%s3 + $0x158] sm:$0xff]
        %v849 = vld [vmem:[%s3 + $0x160] sm:$0xff]
        %v850 = vld [vmem:[%s3 + $0x168] sm:$0xff]
        %v851 = vld [vmem:[%s3 + $0x170] sm:$0xff]
        %v852 = vld [vmem:[%s3 + $0x178] sm:$0xff]
        %v853 = vld [vmem:[%s4] sm:$0x1]
        %v855 = vperm.slane %v853, 0
        %857 = vmatpush.msra.mxu0 %v820
        %858 = vmatpush.msra.mxu0 %v819
        %859 = vmatpush.msra.mxu0 %v818
        %860 = vmatpush.msra.mxu0 %v817
        %861 = vmatpush.msra.mxu0 %v816
        %862 = vmatpush.msra.mxu0 %v815
        %863 = vmatpush.msra.mxu0 %v814
        %864 = vmatpush.msra.mxu0 %v813
        %865 = vmatpush.msra.mxu0 %v812
        %866 = vmatpush.msra.mxu0 %v811
        %867 = vmatpush.msra.mxu0 %v810
        %868 = vmatpush.msra.mxu0 %v809
        %869 = vmatpush.msra.mxu0 %v808
        %870 = vmatpush.msra.mxu0 %v807
        %871 = vmatpush.msra.mxu0 %v806
        %872 = vmatpush.msra.mxu0 %v805
        %873 = vmatmul.f32.gmra.mxu0 %v802
        %v874 = vpop.f32.mrf.mxu0
        %v875 = vadd.f32 %v855, %v874
        %876 = vdwg.mxu0
        %877 = vmatpush.msra.mxu0 %v836
        %878 = vmatpush.msra.mxu0 %v835
        %879 = vmatpush.msra.mxu0 %v834
        %880 = vmatpush.msra.mxu0 %v833
        %881 = vmatpush.msra.mxu0 %v832
        %882 = vmatpush.msra.mxu0 %v831
        %883 = vmatpush.msra.mxu0 %v830
        %884 = vmatpush.msra.mxu0 %v829
        %885 = vmatpush.msra.mxu0 %v828
        %886 = vmatpush.msra.mxu0 %v827
        %887 = vmatpush.msra.mxu0 %v826
        %888 = vmatpush.msra.mxu0 %v825
        %889 = vmatpush.msra.mxu0 %v824
        %890 = vmatpush.msra.mxu0 %v823
        %891 = vmatpush.msra.mxu0 %v822
        %892 = vmatpush.msra.mxu0 %v821
        %893 = vmatmul.f32.gmra.mxu0 %v803
        %v894 = vpop.f32.mrf.mxu0
        %v895 = vadd.f32 %v875, %v894
        %896 = vdwg.mxu0
        %897 = vmatpush.msra.mxu0 %v852
        %898 = vmatpush.msra.mxu0 %v851
        %899 = vmatpush.msra.mxu0 %v850
        %900 = vmatpush.msra.mxu0 %v849
        %901 = vmatpush.msra.mxu0 %v848
        %902 = vmatpush.msra.mxu0 %v847
        %903 = vmatpush.msra.mxu0 %v846
        %904 = vmatpush.msra.mxu0 %v845
        %905 = vmatpush.msra.mxu0 %v844
        %906 = vmatpush.msra.mxu0 %v843
        %907 = vmatpush.msra.mxu0 %v842
        %908 = vmatpush.msra.mxu0 %v841
        %909 = vmatpush.msra.mxu0 %v840
        %910 = vmatpush.msra.mxu0 %v839
        %911 = vmatpush.msra.mxu0 %v838
        %912 = vmatpush.msra.mxu0 %v837
        %913 = vmatmul.f32.gmra.mxu0 %v804
        %v914 = vpop.f32.mrf.mxu0
        %v915 = vadd.f32 %v895, %v914
        %916 = vdwg.mxu0
        %v917 = vmax.f32 %v915, 0.0
        %918 = vst [vmem:[#allocation2 + $0x7] sm:$0x1] 0.0
        %919 = vst [vmem:[#allocation2 + $0xe] sm:$0x1] 0.0
        %920 = vst [vmem:[#allocation2 + $0x8] sm:$0x3f] %v917
        %v921 = vld [vmem:[#allocation2 + $0x7] sm:$0x3f]
        %v922 = vld [vmem:[#allocation2 + $0x8] sm:$0x3f]
        %v923 = vld [vmem:[#allocation2 + $0x9] sm:$0x3f]
        %v924 = vld [vmem:[%s3] sm:$0xff]
        %v925 = vld [vmem:[%s3 + $0x8] sm:$0xff]
        %v926 = vld [vmem:[%s3 + $0x10] sm:$0xff]
        %v927 = vld [vmem:[%s3 + $0x18] sm:$0xff]
        %v928 = vld [vmem:[%s3 + $0x20] sm:$0xff]
        %v929 = vld [vmem:[%s3 + $0x28] sm:$0xff]
        %v930 = vld [vmem:[%s3 + $0x30] sm:$0xff]
        %v931 = vld [vmem:[%s3 + $0x38] sm:$0xff]
        %v932 = vld [vmem:[%s3 + $0x40] sm:$0xff]
        %v933 = vld [vmem:[%s3 + $0x48] sm:$0xff]
        %v934 = vld [vmem:[%s3 + $0x50] sm:$0xff]
        %v935 = vld [vmem:[%s3 + $0x58] sm:$0xff]
        %v936 = vld [vmem:[%s3 + $0x60] sm:$0xff]
        %v937 = vld [vmem:[%s3 + $0x68] sm:$0xff]
        %v938 = vld [vmem:[%s3 + $0x70] sm:$0xff]
        %v939 = vld [vmem:[%s3 + $0x78] sm:$0xff]
        %v940 = vld [vmem:[%s3 + $0x80] sm:$0xff]
        %v941 = vld [vmem:[%s3 + $0x88] sm:$0xff]
        %v942 = vld [vmem:[%s3 + $0x90] sm:$0xff]
        %v943 = vld [vmem:[%s3 + $0x98] sm:$0xff]
        %v944 = vld [vmem:[%s3 + $0xa0] sm:$0xff]
        %v945 = vld [vmem:[%s3 + $0xa8] sm:$0xff]
        %v946 = vld [vmem:[%s3 + $0xb0] sm:$0xff]
        %v947 = vld [vmem:[%s3 + $0xb8] sm:$0xff]
        %v948 = vld [vmem:[%s3 + $0xc0] sm:$0xff]
        %v949 = vld [vmem:[%s3 + $0xc8] sm:$0xff]
        %v950 = vld [vmem:[%s3 + $0xd0] sm:$0xff]
        %v951 = vld [vmem:[%s3 + $0xd8] sm:$0xff]
        %v952 = vld [vmem:[%s3 + $0xe0] sm:$0xff]
        %v953 = vld [vmem:[%s3 + $0xe8] sm:$0xff]
        %v954 = vld [vmem:[%s3 + $0xf0] sm:$0xff]
        %v955 = vld [vmem:[%s3 + $0xf8] sm:$0xff]
        %v956 = vld [vmem:[%s3 + $0x100] sm:$0xff]
        %v957 = vld [vmem:[%s3 + $0x108] sm:$0xff]
        %v958 = vld [vmem:[%s3 + $0x110] sm:$0xff]
        %v959 = vld [vmem:[%s3 + $0x118] sm:$0xff]
        %v960 = vld [vmem:[%s3 + $0x120] sm:$0xff]
        %v961 = vld [vmem:[%s3 + $0x128] sm:$0xff]
        %v962 = vld [vmem:[%s3 + $0x130] sm:$0xff]
        %v963 = vld [vmem:[%s3 + $0x138] sm:$0xff]
        %v964 = vld [vmem:[%s3 + $0x140] sm:$0xff]
        %v965 = vld [vmem:[%s3 + $0x148] sm:$0xff]
        %v966 = vld [vmem:[%s3 + $0x150] sm:$0xff]
        %v967 = vld [vmem:[%s3 + $0x158] sm:$0xff]
        %v968 = vld [vmem:[%s3 + $0x160] sm:$0xff]
        %v969 = vld [vmem:[%s3 + $0x168] sm:$0xff]
        %v970 = vld [vmem:[%s3 + $0x170] sm:$0xff]
        %v971 = vld [vmem:[%s3 + $0x178] sm:$0xff]
        %v972 = vld [vmem:[%s4] sm:$0x1]
        %v974 = vperm.slane %v972, 0
        %976 = vmatpush.msra.mxu0 %v939
        %977 = vmatpush.msra.mxu0 %v938
        %978 = vmatpush.msra.mxu0 %v937
        %979 = vmatpush.msra.mxu0 %v936
        %980 = vmatpush.msra.mxu0 %v935
        %981 = vmatpush.msra.mxu0 %v934
        %982 = vmatpush.msra.mxu0 %v933
        %983 = vmatpush.msra.mxu0 %v932
        %984 = vmatpush.msra.mxu0 %v931
        %985 = vmatpush.msra.mxu0 %v930
        %986 = vmatpush.msra.mxu0 %v929
        %987 = vmatpush.msra.mxu0 %v928
        %988 = vmatpush.msra.mxu0 %v927
        %989 = vmatpush.msra.mxu0 %v926
        %990 = vmatpush.msra.mxu0 %v925
        %991 = vmatpush.msra.mxu0 %v924
        %992 = vmatmul.f32.gmra.mxu0 %v921
        %v993 = vpop.f32.mrf.mxu0
        %v994 = vadd.f32 %v974, %v993
        %995 = vdwg.mxu0
        %996 = vmatpush.msra.mxu0 %v955
        %997 = vmatpush.msra.mxu0 %v954
        %998 = vmatpush.msra.mxu0 %v953
        %999 = vmatpush.msra.mxu0 %v952
        %1000 = vmatpush.msra.mxu0 %v951
        %1001 = vmatpush.msra.mxu0 %v950
        %1002 = vmatpush.msra.mxu0 %v949
        %1003 = vmatpush.msra.mxu0 %v948
        %1004 = vmatpush.msra.mxu0 %v947
        %1005 = vmatpush.msra.mxu0 %v946
        %1006 = vmatpush.msra.mxu0 %v945
        %1007 = vmatpush.msra.mxu0 %v944
        %1008 = vmatpush.msra.mxu0 %v943
        %1009 = vmatpush.msra.mxu0 %v942
        %1010 = vmatpush.msra.mxu0 %v941
        %1011 = vmatpush.msra.mxu0 %v940
        %1012 = vmatmul.f32.gmra.mxu0 %v922
        %v1013 = vpop.f32.mrf.mxu0
        %v1014 = vadd.f32 %v994, %v1013
        %1015 = vdwg.mxu0
        %1016 = vmatpush.msra.mxu0 %v971
        %1017 = vmatpush.msra.mxu0 %v970
        %1018 = vmatpush.msra.mxu0 %v969
        %1019 = vmatpush.msra.mxu0 %v968
        %1020 = vmatpush.msra.mxu0 %v967
        %1021 = vmatpush.msra.mxu0 %v966
        %1022 = vmatpush.msra.mxu0 %v965
        %1023 = vmatpush.msra.mxu0 %v964
        %1024 = vmatpush.msra.mxu0 %v963
        %1025 = vmatpush.msra.mxu0 %v962
        %1026 = vmatpush.msra.mxu0 %v961
        %1027 = vmatpush.msra.mxu0 %v960
        %1028 = vmatpush.msra.mxu0 %v959
        %1029 = vmatpush.msra.mxu0 %v958
        %1030 = vmatpush.msra.mxu0 %v957
        %1031 = vmatpush.msra.mxu0 %v956
        %1032 = vmatmul.f32.gmra.mxu0 %v923
        %v1033 = vpop.f32.mrf.mxu0
        %v1034 = vadd.f32 %v1014, %v1033
        %1035 = vdwg.mxu0
        %v1036 = vadd.f32 %v1034, %v796
        %1037 = vst [vmem:[#allocation2 + $0xe] sm:$0x1] 0.0
        %1038 = vst [vmem:[#allocation2 + $0x8] sm:$0x3f] %v1036
        %v1039 = vld [vmem:[#allocation2 + $0x8] sm:$0x1f]
        %v1040 = vld [vmem:[#allocation2 + $0x9] sm:$0x1f]
        %v1041 = vmax.f32 %v1039, %v1040
        %v1042 = vld [vmem:[#allocation2 + $0xa] sm:$0x1f]
        %v1043 = vmax.f32 %v1041, %v1042
        %vm1044 = vcmask 39936
        %v1045 = vsel %vm1044, %v769, 0
        %vm1047 = vcmask 1044480
        %v1049 = vsel %vm1047, %v1043, 0
        %1051 = vmatpush.msra.mxu0 0.0
        %1052 = vmatpush.msra.mxu0 0.0
        %1053 = vmatpush.msra.mxu0 0.0
        %1054 = vmatpush.msra.mxu0 0.0
        %1055 = vmatpush.msra.mxu0 0.0
        %1056 = vmatpush.msra.mxu0 0.0
        %1057 = vmatpush.msra.mxu0 0.0
        %1058 = vmatpush.msra.mxu0 0.0
        %1059 = vmatpush.msra.mxu0 0.0
        %1060 = vmatpush.msra.mxu0 0.0
        %1061 = vmatpush.msra.mxu0 0.0
        %1062 = vmatpush.msra.mxu0 0.0
        %1063 = vmatpush.msra.mxu0 0.0
        %1064 = vmatpush.msra.mxu0 0.0
        %1065 = vmatpush.msra.mxu0 0.0
        %1066 = vmatpush.msra.mxu0 %v1049
        %1067 = vmatmul.f32.gmra.mxu0 %v1045
        %v1068 = vpop.f32.mrf.mxu0
        %v1069 = vadd.f32 0.0, %v1068
        %1070 = vdwg.mxu0
        %v1071 = vmax.f32 %v1069, 0.0
        %1072 = vst [vmem:[#allocation2 + $0x7] sm:$0x1] 0.0
        %1073 = vst [vmem:[#allocation2 + $0xb] sm:$0x1] 0.0
        %1074 = vst [vmem:[#allocation2 + $0x8] sm:$0x7] %v1071
        %v1075 = vld [vmem:[#allocation2 + $0x7] sm:$0x7]
        %v1076 = vld [vmem:[#allocation2 + $0x8] sm:$0x7]
        %v1077 = vld [vmem:[#allocation2 + $0x9] sm:$0x7]
        %v1078 = vld [vmem:[%s3] sm:$0xff]
        %v1079 = vld [vmem:[%s3 + $0x8] sm:$0xff]
        %v1080 = vld [vmem:[%s3 + $0x10] sm:$0xff]
        %v1081 = vld [vmem:[%s3 + $0x18] sm:$0xff]
        %v1082 = vld [vmem:[%s3 + $0x20] sm:$0xff]
        %v1083 = vld [vmem:[%s3 + $0x28] sm:$0xff]
        %v1084 = vld [vmem:[%s3 + $0x30] sm:$0xff]
        %v1085 = vld [vmem:[%s3 + $0x38] sm:$0xff]
        %v1086 = vld [vmem:[%s3 + $0x40] sm:$0xff]
        %v1087 = vld [vmem:[%s3 + $0x48] sm:$0xff]
        %v1088 = vld [vmem:[%s3 + $0x50] sm:$0xff]
        %v1089 = vld [vmem:[%s3 + $0x58] sm:$0xff]
        %v1090 = vld [vmem:[%s3 + $0x60] sm:$0xff]
        %v1091 = vld [vmem:[%s3 + $0x68] sm:$0xff]
        %v1092 = vld [vmem:[%s3 + $0x70] sm:$0xff]
        %v1093 = vld [vmem:[%s3 + $0x78] sm:$0xff]
        %v1094 = vld [vmem:[%s3 + $0x80] sm:$0xff]
        %v1095 = vld [vmem:[%s3 + $0x88] sm:$0xff]
        %v1096 = vld [vmem:[%s3 + $0x90] sm:$0xff]
        %v1097 = vld [vmem:[%s3 + $0x98] sm:$0xff]
        %v1098 = vld [vmem:[%s3 + $0xa0] sm:$0xff]
        %v1099 = vld [vmem:[%s3 + $0xa8] sm:$0xff]
        %v1100 = vld [vmem:[%s3 + $0xb0] sm:$0xff]
        %v1101 = vld [vmem:[%s3 + $0xb8] sm:$0xff]
        %v1102 = vld [vmem:[%s3 + $0xc0] sm:$0xff]
        %v1103 = vld [vmem:[%s3 + $0xc8] sm:$0xff]
        %v1104 = vld [vmem:[%s3 + $0xd0] sm:$0xff]
        %v1105 = vld [vmem:[%s3 + $0xd8] sm:$0xff]
        %v1106 = vld [vmem:[%s3 + $0xe0] sm:$0xff]
        %v1107 = vld [vmem:[%s3 + $0xe8] sm:$0xff]
        %v1108 = vld [vmem:[%s3 + $0xf0] sm:$0xff]
        %v1109 = vld [vmem:[%s3 + $0xf8] sm:$0xff]
        %v1110 = vld [vmem:[%s3 + $0x100] sm:$0xff]
        %v1111 = vld [vmem:[%s3 + $0x108] sm:$0xff]
        %v1112 = vld [vmem:[%s3 + $0x110] sm:$0xff]
        %v1113 = vld [vmem:[%s3 + $0x118] sm:$0xff]
        %v1114 = vld [vmem:[%s3 + $0x120] sm:$0xff]
        %v1115 = vld [vmem:[%s3 + $0x128] sm:$0xff]
        %v1116 = vld [vmem:[%s3 + $0x130] sm:$0xff]
        %v1117 = vld [vmem:[%s3 + $0x138] sm:$0xff]
        %v1118 = vld [vmem:[%s3 + $0x140] sm:$0xff]
        %v1119 = vld [vmem:[%s3 + $0x148] sm:$0xff]
        %v1120 = vld [vmem:[%s3 + $0x150] sm:$0xff]
        %v1121 = vld [vmem:[%s3 + $0x158] sm:$0xff]
        %v1122 = vld [vmem:[%s3 + $0x160] sm:$0xff]
        %v1123 = vld [vmem:[%s3 + $0x168] sm:$0xff]
        %v1124 = vld [vmem:[%s3 + $0x170] sm:$0xff]
        %v1125 = vld [vmem:[%s3 + $0x178] sm:$0xff]
        %v1126 = vld [vmem:[%s4] sm:$0x1]
        %v1128 = vperm.slane %v1126, 0
        %1130 = vmatpush.msra.mxu0 %v1093
        %1131 = vmatpush.msra.mxu0 %v1092
        %1132 = vmatpush.msra.mxu0 %v1091
        %1133 = vmatpush.msra.mxu0 %v1090
        %1134 = vmatpush.msra.mxu0 %v1089
        %1135 = vmatpush.msra.mxu0 %v1088
        %1136 = vmatpush.msra.mxu0 %v1087
        %1137 = vmatpush.msra.mxu0 %v1086
        %1138 = vmatpush.msra.mxu0 %v1085
        %1139 = vmatpush.msra.mxu0 %v1084
        %1140 = vmatpush.msra.mxu0 %v1083
        %1141 = vmatpush.msra.mxu0 %v1082
        %1142 = vmatpush.msra.mxu0 %v1081
        %1143 = vmatpush.msra.mxu0 %v1080
        %1144 = vmatpush.msra.mxu0 %v1079
        %1145 = vmatpush.msra.mxu0 %v1078
        %1146 = vmatmul.f32.gmra.mxu0 %v1075
        %v1147 = vpop.f32.mrf.mxu0
        %v1148 = vadd.f32 %v1128, %v1147
        %1149 = vdwg.mxu0
        %1150 = vmatpush.msra.mxu0 %v1109
        %1151 = vmatpush.msra.mxu0 %v1108
        %1152 = vmatpush.msra.mxu0 %v1107
        %1153 = vmatpush.msra.mxu0 %v1106
        %1154 = vmatpush.msra.mxu0 %v1105
        %1155 = vmatpush.msra.mxu0 %v1104
        %1156 = vmatpush.msra.mxu0 %v1103
        %1157 = vmatpush.msra.mxu0 %v1102
        %1158 = vmatpush.msra.mxu0 %v1101
        %1159 = vmatpush.msra.mxu0 %v1100
        %1160 = vmatpush.msra.mxu0 %v1099
        %1161 = vmatpush.msra.mxu0 %v1098
        %1162 = vmatpush.msra.mxu0 %v1097
        %1163 = vmatpush.msra.mxu0 %v1096
        %1164 = vmatpush.msra.mxu0 %v1095
        %1165 = vmatpush.msra.mxu0 %v1094
        %1166 = vmatmul.f32.gmra.mxu0 %v1076
        %v1167 = vpop.f32.mrf.mxu0
        %v1168 = vadd.f32 %v1148, %v1167
        %1169 = vdwg.mxu0
        %1170 = vmatpush.msra.mxu0 %v1125
        %1171 = vmatpush.msra.mxu0 %v1124
        %1172 = vmatpush.msra.mxu0 %v1123
        %1173 = vmatpush.msra.mxu0 %v1122
        %1174 = vmatpush.msra.mxu0 %v1121
        %1175 = vmatpush.msra.mxu0 %v1120
        %1176 = vmatpush.msra.mxu0 %v1119
        %1177 = vmatpush.msra.mxu0 %v1118
        %1178 = vmatpush.msra.mxu0 %v1117
        %1179 = vmatpush.msra.mxu0 %v1116
        %1180 = vmatpush.msra.mxu0 %v1115
        %1181 = vmatpush.msra.mxu0 %v1114
        %1182 = vmatpush.msra.mxu0 %v1113
        %1183 = vmatpush.msra.mxu0 %v1112
        %1184 = vmatpush.msra.mxu0 %v1111
        %1185 = vmatpush.msra.mxu0 %v1110
        %1186 = vmatmul.f32.gmra.mxu0 %v1077
        %v1187 = vpop.f32.mrf.mxu0
        %v1188 = vadd.f32 %v1168, %v1187
        %1189 = vdwg.mxu0
        %v1190 = vmax.f32 %v1188, 0.0
        %1191 = vst [vmem:[#allocation2 + $0x7] sm:$0x1] 0.0
        %1192 = vst [vmem:[#allocation2 + $0xb] sm:$0x1] 0.0
        %1193 = vst [vmem:[#allocation2 + $0x8] sm:$0x7] %v1190
        %v1194 = vld [vmem:[#allocation2 + $0x7] sm:$0x7]
        %v1195 = vld [vmem:[#allocation2 + $0x8] sm:$0x7]
        %v1196 = vld [vmem:[#allocation2 + $0x9] sm:$0x7]
        %v1197 = vld [vmem:[%s3] sm:$0xff]
        %v1198 = vld [vmem:[%s3 + $0x8] sm:$0xff]
        %v1199 = vld [vmem:[%s3 + $0x10] sm:$0xff]
        %v1200 = vld [vmem:[%s3 + $0x18] sm:$0xff]
        %v1201 = vld [vmem:[%s3 + $0x20] sm:$0xff]
        %v1202 = vld [vmem:[%s3 + $0x28] sm:$0xff]
        %v1203 = vld [vmem:[%s3 + $0x30] sm:$0xff]
        %v1204 = vld [vmem:[%s3 + $0x38] sm:$0xff]
        %v1205 = vld [vmem:[%s3 + $0x40] sm:$0xff]
        %v1206 = vld [vmem:[%s3 + $0x48] sm:$0xff]
        %v1207 = vld [vmem:[%s3 + $0x50] sm:$0xff]
        %v1208 = vld [vmem:[%s3 + $0x58] sm:$0xff]
        %v1209 = vld [vmem:[%s3 + $0x60] sm:$0xff]
        %v1210 = vld [vmem:[%s3 + $0x68] sm:$0xff]
        %v1211 = vld [vmem:[%s3 + $0x70] sm:$0xff]
        %v1212 = vld [vmem:[%s3 + $0x78] sm:$0xff]
        %v1213 = vld [vmem:[%s3 + $0x80] sm:$0xff]
        %v1214 = vld [vmem:[%s3 + $0x88] sm:$0xff]
        %v1215 = vld [vmem:[%s3 + $0x90] sm:$0xff]
        %v1216 = vld [vmem:[%s3 + $0x98] sm:$0xff]
        %v1217 = vld [vmem:[%s3 + $0xa0] sm:$0xff]
        %v1218 = vld [vmem:[%s3 + $0xa8] sm:$0xff]
        %v1219 = vld [vmem:[%s3 + $0xb0] sm:$0xff]
        %v1220 = vld [vmem:[%s3 + $0xb8] sm:$0xff]
        %v1221 = vld [vmem:[%s3 + $0xc0] sm:$0xff]
        %v1222 = vld [vmem:[%s3 + $0xc8] sm:$0xff]
        %v1223 = vld [vmem:[%s3 + $0xd0] sm:$0xff]
        %v1224 = vld [vmem:[%s3 + $0xd8] sm:$0xff]
        %v1225 = vld [vmem:[%s3 + $0xe0] sm:$0xff]
        %v1226 = vld [vmem:[%s3 + $0xe8] sm:$0xff]
        %v1227 = vld [vmem:[%s3 + $0xf0] sm:$0xff]
        %v1228 = vld [vmem:[%s3 + $0xf8] sm:$0xff]
        %v1229 = vld [vmem:[%s3 + $0x100] sm:$0xff]
        %v1230 = vld [vmem:[%s3 + $0x108] sm:$0xff]
        %v1231 = vld [vmem:[%s3 + $0x110] sm:$0xff]
        %v1232 = vld [vmem:[%s3 + $0x118] sm:$0xff]
        %v1233 = vld [vmem:[%s3 + $0x120] sm:$0xff]
        %v1234 = vld [vmem:[%s3 + $0x128] sm:$0xff]
        %v1235 = vld [vmem:[%s3 + $0x130] sm:$0xff]
        %v1236 = vld [vmem:[%s3 + $0x138] sm:$0xff]
        %v1237 = vld [vmem:[%s3 + $0x140] sm:$0xff]
        %v1238 = vld [vmem:[%s3 + $0x148] sm:$0xff]
        %v1239 = vld [vmem:[%s3 + $0x150] sm:$0xff]
        %v1240 = vld [vmem:[%s3 + $0x158] sm:$0xff]
        %v1241 = vld [vmem:[%s3 + $0x160] sm:$0xff]
        %v1242 = vld [vmem:[%s3 + $0x168] sm:$0xff]
        %v1243 = vld [vmem:[%s3 + $0x170] sm:$0xff]
        %v1244 = vld [vmem:[%s3 + $0x178] sm:$0xff]
        %v1245 = vld [vmem:[%s4] sm:$0x1]
        %v1247 = vperm.slane %v1245, 0
        %1249 = vmatpush.msra.mxu0 %v1212
        %1250 = vmatpush.msra.mxu0 %v1211
        %1251 = vmatpush.msra.mxu0 %v1210
        %1252 = vmatpush.msra.mxu0 %v1209
        %1253 = vmatpush.msra.mxu0 %v1208
        %1254 = vmatpush.msra.mxu0 %v1207
        %1255 = vmatpush.msra.mxu0 %v1206
        %1256 = vmatpush.msra.mxu0 %v1205
        %1257 = vmatpush.msra.mxu0 %v1204
        %1258 = vmatpush.msra.mxu0 %v1203
        %1259 = vmatpush.msra.mxu0 %v1202
        %1260 = vmatpush.msra.mxu0 %v1201
        %1261 = vmatpush.msra.mxu0 %v1200
        %1262 = vmatpush.msra.mxu0 %v1199
        %1263 = vmatpush.msra.mxu0 %v1198
        %1264 = vmatpush.msra.mxu0 %v1197
        %1265 = vmatmul.f32.gmra.mxu0 %v1194
        %v1266 = vpop.f32.mrf.mxu0
        %v1267 = vadd.f32 %v1247, %v1266
        %1268 = vdwg.mxu0
        %1269 = vmatpush.msra.mxu0 %v1228
        %1270 = vmatpush.msra.mxu0 %v1227
        %1271 = vmatpush.msra.mxu0 %v1226
        %1272 = vmatpush.msra.mxu0 %v1225
        %1273 = vmatpush.msra.mxu0 %v1224
        %1274 = vmatpush.msra.mxu0 %v1223
        %1275 = vmatpush.msra.mxu0 %v1222
        %1276 = vmatpush.msra.mxu0 %v1221
        %1277 = vmatpush.msra.mxu0 %v1220
        %1278 = vmatpush.msra.mxu0 %v1219
        %1279 = vmatpush.msra.mxu0 %v1218
        %1280 = vmatpush.msra.mxu0 %v1217
        %1281 = vmatpush.msra.mxu0 %v1216
        %1282 = vmatpush.msra.mxu0 %v1215
        %1283 = vmatpush.msra.mxu0 %v1214
        %1284 = vmatpush.msra.mxu0 %v1213
        %1285 = vmatmul.f32.gmra.mxu0 %v1195
        %v1286 = vpop.f32.mrf.mxu0
        %v1287 = vadd.f32 %v1267, %v1286
        %1288 = vdwg.mxu0
        %1289 = vmatpush.msra.mxu0 %v1244
        %1290 = vmatpush.msra.mxu0 %v1243
        %1291 = vmatpush.msra.mxu0 %v1242
        %1292 = vmatpush.msra.mxu0 %v1241
        %1293 = vmatpush.msra.mxu0 %v1240
        %1294 = vmatpush.msra.mxu0 %v1239
        %1295 = vmatpush.msra.mxu0 %v1238
        %1296 = vmatpush.msra.mxu0 %v1237
        %1297 = vmatpush.msra.mxu0 %v1236
        %1298 = vmatpush.msra.mxu0 %v1235
        %1299 = vmatpush.msra.mxu0 %v1234
        %1300 = vmatpush.msra.mxu0 %v1233
        %1301 = vmatpush.msra.mxu0 %v1232
        %1302 = vmatpush.msra.mxu0 %v1231
        %1303 = vmatpush.msra.mxu0 %v1230
        %1304 = vmatpush.msra.mxu0 %v1229
        %1305 = vmatmul.f32.gmra.mxu0 %v1196
        %v1306 = vpop.f32.mrf.mxu0
        %v1307 = vadd.f32 %v1287, %v1306
        %1308 = vdwg.mxu0
        %v1309 = vadd.f32 %v1307, %v1069
        %1310 = vst [vmem:[#allocation2 + $0xb] sm:$0x1] 0.0
        %1311 = vst [vmem:[#allocation2 + $0x8] sm:$0x7] %v1309
        %v1312 = vld [vmem:[#allocation2 + $0x8] sm:$0x3]
        %v1313 = vld [vmem:[#allocation2 + $0x9] sm:$0x3]
        %v1314 = vmax.f32 %v1312, %v1313
        %v1315 = vld [vmem:[#allocation2 + $0xa] sm:$0x3]
        %v1316 = vmax.f32 %v1314, %v1315
        %v1317 = vmax.f32 %v1316, 0.0
        %1318 = vst [vmem:[#allocation2 + $0x7] sm:$0x1] 0.0
        %1319 = vst [vmem:[#allocation2 + $0x9] sm:$0x1] 0.0
        %1320 = vst [vmem:[#allocation2 + $0x8] sm:$0x1] %v1317
        %v1321 = vld [vmem:[#allocation2 + $0x7] sm:$0x1]
        %v1322 = vld [vmem:[#allocation2 + $0x8] sm:$0x1]
        %v1323 = vld [vmem:[#allocation2 + $0x9] sm:$0x1]
        %v1324 = vld [vmem:[%s3] sm:$0xff]
        %v1325 = vld [vmem:[%s3 + $0x8] sm:$0xff]
        %v1326 = vld [vmem:[%s3 + $0x10] sm:$0xff]
        %v1327 = vld [vmem:[%s3 + $0x18] sm:$0xff]
        %v1328 = vld [vmem:[%s3 + $0x20] sm:$0xff]
        %v1329 = vld [vmem:[%s3 + $0x28] sm:$0xff]
        %v1330 = vld [vmem:[%s3 + $0x30] sm:$0xff]
        %v1331 = vld [vmem:[%s3 + $0x38] sm:$0xff]
        %v1332 = vld [vmem:[%s3 + $0x40] sm:$0xff]
        %v1333 = vld [vmem:[%s3 + $0x48] sm:$0xff]
        %v1334 = vld [vmem:[%s3 + $0x50] sm:$0xff]
        %v1335 = vld [vmem:[%s3 + $0x58] sm:$0xff]
        %v1336 = vld [vmem:[%s3 + $0x60] sm:$0xff]
        %v1337 = vld [vmem:[%s3 + $0x68] sm:$0xff]
        %v1338 = vld [vmem:[%s3 + $0x70] sm:$0xff]
        %v1339 = vld [vmem:[%s3 + $0x78] sm:$0xff]
        %v1340 = vld [vmem:[%s3 + $0x80] sm:$0xff]
        %v1341 = vld [vmem:[%s3 + $0x88] sm:$0xff]
        %v1342 = vld [vmem:[%s3 + $0x90] sm:$0xff]
        %v1343 = vld [vmem:[%s3 + $0x98] sm:$0xff]
        %v1344 = vld [vmem:[%s3 + $0xa0] sm:$0xff]
        %v1345 = vld [vmem:[%s3 + $0xa8] sm:$0xff]
        %v1346 = vld [vmem:[%s3 + $0xb0] sm:$0xff]
        %v1347 = vld [vmem:[%s3 + $0xb8] sm:$0xff]
        %v1348 = vld [vmem:[%s3 + $0xc0] sm:$0xff]
        %v1349 = vld [vmem:[%s3 + $0xc8] sm:$0xff]
        %v1350 = vld [vmem:[%s3 + $0xd0] sm:$0xff]
        %v1351 = vld [vmem:[%s3 + $0xd8] sm:$0xff]
        %v1352 = vld [vmem:[%s3 + $0xe0] sm:$0xff]
        %v1353 = vld [vmem:[%s3 + $0xe8] sm:$0xff]
        %v1354 = vld [vmem:[%s3 + $0xf0] sm:$0xff]
        %v1355 = vld [vmem:[%s3 + $0xf8] sm:$0xff]
        %v1356 = vld [vmem:[%s3 + $0x100] sm:$0xff]
        %v1357 = vld [vmem:[%s3 + $0x108] sm:$0xff]
        %v1358 = vld [vmem:[%s3 + $0x110] sm:$0xff]
        %v1359 = vld [vmem:[%s3 + $0x118] sm:$0xff]
        %v1360 = vld [vmem:[%s3 + $0x120] sm:$0xff]
        %v1361 = vld [vmem:[%s3 + $0x128] sm:$0xff]
        %v1362 = vld [vmem:[%s3 + $0x130] sm:$0xff]
        %v1363 = vld [vmem:[%s3 + $0x138] sm:$0xff]
        %v1364 = vld [vmem:[%s3 + $0x140] sm:$0xff]
        %v1365 = vld [vmem:[%s3 + $0x148] sm:$0xff]
        %v1366 = vld [vmem:[%s3 + $0x150] sm:$0xff]
        %v1367 = vld [vmem:[%s3 + $0x158] sm:$0xff]
        %v1368 = vld [vmem:[%s3 + $0x160] sm:$0xff]
        %v1369 = vld [vmem:[%s3 + $0x168] sm:$0xff]
        %v1370 = vld [vmem:[%s3 + $0x170] sm:$0xff]
        %v1371 = vld [vmem:[%s3 + $0x178] sm:$0xff]
        %v1372 = vld [vmem:[%s4] sm:$0x1]
        %1373 = vmatpush.msra.mxu0 %v1339
        %1374 = vmatpush.msra.mxu0 %v1338
        %1375 = vmatpush.msra.mxu0 %v1337
        %1376 = vmatpush.msra.mxu0 %v1336
        %1377 = vmatpush.msra.mxu0 %v1335
        %1378 = vmatpush.msra.mxu0 %v1334
        %1379 = vmatpush.msra.mxu0 %v1333
        %1380 = vmatpush.msra.mxu0 %v1332
        %1381 = vmatpush.msra.mxu0 %v1331
        %1382 = vmatpush.msra.mxu0 %v1330
        %1383 = vmatpush.msra.mxu0 %v1329
        %1384 = vmatpush.msra.mxu0 %v1328
        %1385 = vmatpush.msra.mxu0 %v1327
        %1386 = vmatpush.msra.mxu0 %v1326
        %1387 = vmatpush.msra.mxu0 %v1325
        %1388 = vmatpush.msra.mxu0 %v1324
        %1389 = vmatmul.f32.gmra.mxu0 %v1321
        %v1390 = vpop.f32.mrf.mxu0
        %v1391 = vadd.f32 %v1372, %v1390
        %1392 = vdwg.mxu0
        %1393 = vmatpush.msra.mxu0 %v1355
        %1394 = vmatpush.msra.mxu0 %v1354
        %1395 = vmatpush.msra.mxu0 %v1353
        %1396 = vmatpush.msra.mxu0 %v1352
        %1397 = vmatpush.msra.mxu0 %v1351
        %1398 = vmatpush.msra.mxu0 %v1350
        %1399 = vmatpush.msra.mxu0 %v1349
        %1400 = vmatpush.msra.mxu0 %v1348
        %1401 = vmatpush.msra.mxu0 %v1347
        %1402 = vmatpush.msra.mxu0 %v1346
        %1403 = vmatpush.msra.mxu0 %v1345
        %1404 = vmatpush.msra.mxu0 %v1344
        %1405 = vmatpush.msra.mxu0 %v1343
        %1406 = vmatpush.msra.mxu0 %v1342
        %1407 = vmatpush.msra.mxu0 %v1341
        %1408 = vmatpush.msra.mxu0 %v1340
        %1409 = vmatmul.f32.gmra.mxu0 %v1322
        %v1410 = vpop.f32.mrf.mxu0
        %v1411 = vadd.f32 %v1391, %v1410
        %1412 = vdwg.mxu0
        %1413 = vmatpush.msra.mxu0 %v1371
        %1414 = vmatpush.msra.mxu0 %v1370
        %1415 = vmatpush.msra.mxu0 %v1369
        %1416 = vmatpush.msra.mxu0 %v1368
        %1417 = vmatpush.msra.mxu0 %v1367
        %1418 = vmatpush.msra.mxu0 %v1366
        %1419 = vmatpush.msra.mxu0 %v1365
        %1420 = vmatpush.msra.mxu0 %v1364
        %1421 = vmatpush.msra.mxu0 %v1363
        %1422 = vmatpush.msra.mxu0 %v1362
        %1423 = vmatpush.msra.mxu0 %v1361
        %1424 = vmatpush.msra.mxu0 %v1360
        %1425 = vmatpush.msra.mxu0 %v1359
        %1426 = vmatpush.msra.mxu0 %v1358
        %1427 = vmatpush.msra.mxu0 %v1357
        %1428 = vmatpush.msra.mxu0 %v1356
        %1429 = vmatmul.f32.gmra.mxu0 %v1323
        %v1430 = vpop.f32.mrf.mxu0
        %v1431 = vadd.f32 %v1411, %v1430
        %1432 = vdwg.mxu0
        %v1433 = vmax.f32 %v1431, 0.0
        %1434 = vst [vmem:[#allocation2 + $0x7] sm:$0x1] 0.0
        %1435 = vst [vmem:[#allocation2 + $0x9] sm:$0x1] 0.0
        %1436 = vst [vmem:[#allocation2 + $0x8] sm:$0x1] %v1433
        %v1437 = vld [vmem:[#allocation2 + $0x7] sm:$0x1]
        %v1438 = vld [vmem:[#allocation2 + $0x8] sm:$0x1]
        %v1439 = vld [vmem:[#allocation2 + $0x9] sm:$0x1]
        %v1440 = vld [vmem:[%s3] sm:$0xff]
        %v1441 = vld [vmem:[%s3 + $0x8] sm:$0xff]
        %v1442 = vld [vmem:[%s3 + $0x10] sm:$0xff]
        %v1443 = vld [vmem:[%s3 + $0x18] sm:$0xff]
        %v1444 = vld [vmem:[%s3 + $0x20] sm:$0xff]
        %v1445 = vld [vmem:[%s3 + $0x28] sm:$0xff]
        %v1446 = vld [vmem:[%s3 + $0x30] sm:$0xff]
        %v1447 = vld [vmem:[%s3 + $0x38] sm:$0xff]
        %v1448 = vld [vmem:[%s3 + $0x40] sm:$0xff]
        %v1449 = vld [vmem:[%s3 + $0x48] sm:$0xff]
        %v1450 = vld [vmem:[%s3 + $0x50] sm:$0xff]
        %v1451 = vld [vmem:[%s3 + $0x58] sm:$0xff]
        %v1452 = vld [vmem:[%s3 + $0x60] sm:$0xff]
        %v1453 = vld [vmem:[%s3 + $0x68] sm:$0xff]
        %v1454 = vld [vmem:[%s3 + $0x70] sm:$0xff]
        %v1455 = vld [vmem:[%s3 + $0x78] sm:$0xff]
        %v1456 = vld [vmem:[%s3 + $0x80] sm:$0xff]
        %v1457 = vld [vmem:[%s3 + $0x88] sm:$0xff]
        %v1458 = vld [vmem:[%s3 + $0x90] sm:$0xff]
        %v1459 = vld [vmem:[%s3 + $0x98] sm:$0xff]
        %v1460 = vld [vmem:[%s3 + $0xa0] sm:$0xff]
        %v1461 = vld [vmem:[%s3 + $0xa8] sm:$0xff]
        %v1462 = vld [vmem:[%s3 + $0xb0] sm:$0xff]
        %v1463 = vld [vmem:[%s3 + $0xb8] sm:$0xff]
        %v1464 = vld [vmem:[%s3 + $0xc0] sm:$0xff]
        %v1465 = vld [vmem:[%s3 + $0xc8] sm:$0xff]
        %v1466 = vld [vmem:[%s3 + $0xd0] sm:$0xff]
        %v1467 = vld [vmem:[%s3 + $0xd8] sm:$0xff]
        %v1468 = vld [vmem:[%s3 + $0xe0] sm:$0xff]
        %v1469 = vld [vmem:[%s3 + $0xe8] sm:$0xff]
        %v1470 = vld [vmem:[%s3 + $0xf0] sm:$0xff]
        %v1471 = vld [vmem:[%s3 + $0xf8] sm:$0xff]
        %v1472 = vld [vmem:[%s3 + $0x100] sm:$0xff]
        %v1473 = vld [vmem:[%s3 + $0x108] sm:$0xff]
        %v1474 = vld [vmem:[%s3 + $0x110] sm:$0xff]
        %v1475 = vld [vmem:[%s3 + $0x118] sm:$0xff]
        %v1476 = vld [vmem:[%s3 + $0x120] sm:$0xff]
        %v1477 = vld [vmem:[%s3 + $0x128] sm:$0xff]
        %v1478 = vld [vmem:[%s3 + $0x130] sm:$0xff]
        %v1479 = vld [vmem:[%s3 + $0x138] sm:$0xff]
        %v1480 = vld [vmem:[%s3 + $0x140] sm:$0xff]
        %v1481 = vld [vmem:[%s3 + $0x148] sm:$0xff]
        %v1482 = vld [vmem:[%s3 + $0x150] sm:$0xff]
        %v1483 = vld [vmem:[%s3 + $0x158] sm:$0xff]
        %v1484 = vld [vmem:[%s3 + $0x160] sm:$0xff]
        %v1485 = vld [vmem:[%s3 + $0x168] sm:$0xff]
        %v1486 = vld [vmem:[%s3 + $0x170] sm:$0xff]
        %v1487 = vld [vmem:[%s3 + $0x178] sm:$0xff]
        %v1488 = vld [vmem:[%s4] sm:$0x1]
        %1489 = vmatpush.msra.mxu0 %v1455
        %1490 = vmatpush.msra.mxu0 %v1454
        %1491 = vmatpush.msra.mxu0 %v1453
        %1492 = vmatpush.msra.mxu0 %v1452
        %1493 = vmatpush.msra.mxu0 %v1451
        %1494 = vmatpush.msra.mxu0 %v1450
        %1495 = vmatpush.msra.mxu0 %v1449
        %1496 = vmatpush.msra.mxu0 %v1448
        %1497 = vmatpush.msra.mxu0 %v1447
        %1498 = vmatpush.msra.mxu0 %v1446
        %1499 = vmatpush.msra.mxu0 %v1445
        %1500 = vmatpush.msra.mxu0 %v1444
        %1501 = vmatpush.msra.mxu0 %v1443
        %1502 = vmatpush.msra.mxu0 %v1442
        %1503 = vmatpush.msra.mxu0 %v1441
        %1504 = vmatpush.msra.mxu0 %v1440
        %1505 = vmatmul.f32.gmra.mxu0 %v1437
        %v1506 = vpop.f32.mrf.mxu0
        %v1507 = vadd.f32 %v1488, %v1506
        %1508 = vdwg.mxu0
        %1509 = vmatpush.msra.mxu0 %v1471
        %1510 = vmatpush.msra.mxu0 %v1470
        %1511 = vmatpush.msra.mxu0 %v1469
        %1512 = vmatpush.msra.mxu0 %v1468
        %1513 = vmatpush.msra.mxu0 %v1467
        %1514 = vmatpush.msra.mxu0 %v1466
        %1515 = vmatpush.msra.mxu0 %v1465
        %1516 = vmatpush.msra.mxu0 %v1464
        %1517 = vmatpush.msra.mxu0 %v1463
        %1518 = vmatpush.msra.mxu0 %v1462
        %1519 = vmatpush.msra.mxu0 %v1461
        %1520 = vmatpush.msra.mxu0 %v1460
        %1521 = vmatpush.msra.mxu0 %v1459
        %1522 = vmatpush.msra.mxu0 %v1458
        %1523 = vmatpush.msra.mxu0 %v1457
        %1524 = vmatpush.msra.mxu0 %v1456
        %1525 = vmatmul.f32.gmra.mxu0 %v1438
        %v1526 = vpop.f32.mrf.mxu0
        %v1527 = vadd.f32 %v1507, %v1526
        %1528 = vdwg.mxu0
        %1529 = vmatpush.msra.mxu0 %v1487
        %1530 = vmatpush.msra.mxu0 %v1486
        %1531 = vmatpush.msra.mxu0 %v1485
        %1532 = vmatpush.msra.mxu0 %v1484
        %1533 = vmatpush.msra.mxu0 %v1483
        %1534 = vmatpush.msra.mxu0 %v1482
        %1535 = vmatpush.msra.mxu0 %v1481
        %1536 = vmatpush.msra.mxu0 %v1480
        %1537 = vmatpush.msra.mxu0 %v1479
        %1538 = vmatpush.msra.mxu0 %v1478
        %1539 = vmatpush.msra.mxu0 %v1477
        %1540 = vmatpush.msra.mxu0 %v1476
        %1541 = vmatpush.msra.mxu0 %v1475
        %1542 = vmatpush.msra.mxu0 %v1474
        %1543 = vmatpush.msra.mxu0 %v1473
        %1544 = vmatpush.msra.mxu0 %v1472
        %1545 = vmatmul.f32.gmra.mxu0 %v1439
        %v1546 = vpop.f32.mrf.mxu0
        %v1547 = vadd.f32 %v1527, %v1546
        %1548 = vdwg.mxu0
        %v1549 = vadd.f32 %v1547, %v1316
        %v1550 = vld [vmem:[%s5] sm:$0xff]
        %v1551 = vld [vmem:[%s5 + $0x8] sm:$0xff]
        %v1552 = vld [vmem:[%s5 + $0x10] sm:$0xff]
        %v1553 = vld [vmem:[%s5 + $0x18] sm:$0xff]
        %v1554 = vld [vmem:[%s5 + $0x20] sm:$0xff]
        %v1555 = vld [vmem:[%s5 + $0x28] sm:$0xff]
        %v1556 = vld [vmem:[%s5 + $0x30] sm:$0xff]
        %v1557 = vld [vmem:[%s5 + $0x38] sm:$0xff]
        %v1558 = vld [vmem:[%s5 + $0x40] sm:$0xff]
        %v1559 = vld [vmem:[%s5 + $0x48] sm:$0xff]
        %v1560 = vld [vmem:[%s5 + $0x50] sm:$0xff]
        %v1561 = vld [vmem:[%s5 + $0x58] sm:$0xff]
        %v1562 = vld [vmem:[%s5 + $0x60] sm:$0xff]
        %v1563 = vld [vmem:[%s5 + $0x68] sm:$0xff]
        %v1564 = vld [vmem:[%s5 + $0x70] sm:$0xff]
        %v1565 = vld [vmem:[%s5 + $0x78] sm:$0xff]
        %v1566 = vld [vmem:[%s6] sm:$0x1]
        %1567 = vmatpush.msra.mxu0 %v1565
        %1568 = vmatpush.msra.mxu0 %v1564
        %1569 = vmatpush.msra.mxu0 %v1563
        %1570 = vmatpush.msra.mxu0 %v1562
        %1571 = vmatpush.msra.mxu0 %v1561
        %1572 = vmatpush.msra.mxu0 %v1560
        %1573 = vmatpush.msra.mxu0 %v1559
        %1574 = vmatpush.msra.mxu0 %v1558
        %1575 = vmatpush.msra.mxu0 %v1557
        %1576 = vmatpush.msra.mxu0 %v1556
        %1577 = vmatpush.msra.mxu0 %v1555
        %1578 = vmatpush.msra.mxu0 %v1554
        %1579 = vmatpush.msra.mxu0 %v1553
        %1580 = vmatpush.msra.mxu0 %v1552
        %1581 = vmatpush.msra.mxu0 %v1551
        %1582 = vmatpush.msra.mxu0 %v1550
        %1583 = vmatmul.f32.gmra.mxu0 %v1549
        %v1584 = vpop.f32.mrf.mxu0
        %v1585 = vadd.f32 %v1566, %v1584
        %1586 = vdwg.mxu0
        %1587 = vst [vmem:[%s341] sm:$0x1] %v1585
        %vm1588 = vcmp.lt.s32.totalorder %v765, 2
        %v1589 = vsel %vm1588, %v1585, -1e+30
        %vm1590 = vcmask 1040384
        %v1591 = vsel %vm1590, %v1589, -inf
        %1592 = vmax.xlane.f32.xlu0 %v1591
        %v1593 = vpop.xlane.xlu0 %1592
        %v1594 = vsub.f32 %v1589, %v1593
        %v1595 = vmul.f32 %v1594, 1.442695
        %v1596 = vpow.pop %v1595
        %v1597 = vsel %vm1590, %v1596, 0.0
        %1598 = vadd.xlane.f32.xlu0 %v1597
        %v1599 = vpop.xlane.xlu0 %1598
        %v1600 = vlog2.pop %v1599
        %v1601 = vmul.f32 %v1600, 0.6931472
        %v1602 = vsub.f32 %v1594, %v1601
        %v1603 = vld [vmem:[%s349] sm:$0x1]
        %v1604 = vmul.f32 %v1603, %v1602
        %v1605 = vsel %vm1590, %v1604, 0.0
        %1606 = vadd.xlane.f32.xlu0 %v1605
        %v1607 = vpop.xlane.xlu0 %1606
        %v1608 = vsub.f32 0.0, %v1607
        %vm1609 = vcmask 0
        %1610 = vst.msk [vmem:[%s352] sm:$0x1] %vm1609, %v1608
        %p1611 = scmp.lt.s32.totalorder %s24, 1
        %s1612 = scalar_select %p1611, %s24, 1
        %s1613 = scalar_lea.vmem %s8, %s1612
        %s1614 = sand.u32 %s236, 1
        %s1615 = scalar_lea.sflag [#allocation4], %s1614
        %s1616 = sand.u32 %s236, 1
        %s1617 = scalar_lea.vmem [#allocation3], %s1616
        // Predicated region
        $region53: #{dpcnn_forward.1} parent=51 // pred_check
          %p1618 = pneg %p220
        $region54: #{dpcnn_forward.1} parent=51 // pred_check_branch
          %1620 = sbr.rel (%p1618) target = $region56
        $region55: #{dpcnn_forward.1} parent=51 // pred_region
          _
        $region56: #{dpcnn_forward.1} parent=51 // pred_fallthru
          _
        // Predicated region
        $region57: #{dpcnn_forward.1} parent=51 // pred_check
          %p1621 = pneg %p246
        $region58: #{dpcnn_forward.1} parent=51 // pred_check_branch
          %1623 = sbr.rel (%p1621) target = $region60
        $region59: #{dpcnn_forward.1} parent=51 // pred_region
          %1625 = vsyncadd %s1615, 0
          %s1626 = scalar_lea.hbm %s9, %s24
          %s1628 = sshll.u32 %s1617, 4
          %s1629 = int_to_ptr.vmem [resolvable:$true] %s1628
          %s1630 = sshll.u32 %s1626, 4
          %s1631 = int_to_ptr.hbm [resolvable:$true] %s1630
          %1633 = dma.vmem_to_hbm [thread:$0]  %s1629, 16, %s1631, %s1615
        $region60: #{dpcnn_forward.1} parent=51 // pred_fallthru
          _
      $region52: #{dpcnn_forward.1} parent=5 // pred_fallthru
        _
      %p1634 = scmp.le.s32.totalorder 2, %s19
      // Predicated region
      $region61: #{dpcnn_forward.1} parent=5 // pred_check
        %p1635 = pneg %p1634
      $region62: #{dpcnn_forward.1} parent=5 // pred_check_branch
        %1637 = sbr.rel (%p1635) target = $region64
      $region63: #{dpcnn_forward.1} parent=5 // pred_region
        %s1638 = ssub.s32 %s19, 2
        // Predicated region
        $region65: #{dpcnn_forward.1} parent=63 // pred_check
          %p1639 = pneg %p226
        $region66: #{dpcnn_forward.1} parent=63 // pred_check_branch
          %1641 = sbr.rel (%p1639) target = $region68
        $region67: #{dpcnn_forward.1} parent=63 // pred_region
          %p1642 = scmp.lt.s32.totalorder %s25, 1
          %s1643 = scalar_select %p1642, %s25, 1
          %s1644 = scalar_lea.vmem %s8, %s1643
        $region68: #{dpcnn_forward.1} parent=63 // pred_fallthru
          _
        // Predicated region
        $region69: #{dpcnn_forward.1} parent=63 // pred_check
          %p1645 = pneg %p252
        $region70: #{dpcnn_forward.1} parent=63 // pred_check_branch
          %1647 = sbr.rel (%p1645) target = $region72
        $region71: #{dpcnn_forward.1} parent=63 // pred_region
          %s1648 = sand.u32 %s237, 1
          %s1649 = scalar_lea.sflag [#allocation4], %s1648
          %s1650 = sand.u32 %s237, 1
          %s1651 = scalar_lea.vmem [#allocation3], %s1650
          %1653 = dma.done %s1649, 16
        $region72: #{dpcnn_forward.1} parent=63 // pred_fallthru
          _
      $region64: #{dpcnn_forward.1} parent=5 // pred_fallthru
        _
    $region6: #{dpcnn_forward.1} parent=1 // loop_footer
      %s23 = sadd.s32 1, %s19
    $region7: #{dpcnn_forward.1} parent=1 // loop_footer_branch
      %18 = sbr.rel target = $region3
    $region8: #{dpcnn_forward.1} parent=1 // loop_exit
      _
    %1654 = vsyncpa [#allocation4], 1
    %s1655 = scalar_lea.sflag [#allocation4], 1
    %1656 = vsyncpa %s1655, 1

</llo_original>
